<compile_context>
chip_gen: v6e
topology: v6e:2x2x1
jax: 0.10.0
libtpu: 0.0.40
codegen_flags: <defaults>
</compile_context>

<pallas_src>
import functools

import numpy as np
import jax
import jax.numpy as jnp
from jax import lax
from jax.experimental import pallas as pl
from jax.experimental.pallas import tpu as pltpu


# ----------------------------------------------------------------------------
# Sensitivity (hipnn default: Gaussians in inverse distance * cos^2 hard cutoff)
# Used by the pure-JAX reference; the kernel computes the Gaussian part in-kernel
# and folds the cutoff into the per-pair geometric coefficients.
# TODO(synk): sensitivity_module is user-pluggable in hippynn; only the default
#             Gaussian-in-inverse-distance + cos^2 cutoff variant is implemented.
# ----------------------------------------------------------------------------
def _cos_cutoff(dist, hard_cutoff):
    c = jnp.cos(jnp.pi * dist / (2.0 * hard_cutoff)) ** 2
    return jnp.where(dist < hard_cutoff, c, 0.0)


def _sensitivity(dist, *, n_dist, mind_soft, maxd_soft, hard_cutoff):
    inv_mu = jnp.linspace(1.0 / maxd_soft, 1.0 / mind_soft, n_dist, dtype=jnp.float32)
    inv_sigma = (1.0 / mind_soft - 1.0 / maxd_soft) / n_dist
    nondim = ((1.0 / dist)[:, None] - inv_mu[None, :]) ** 2 / (inv_sigma ** 2)
    base = jnp.exp(-0.5 * nondim)
    return base * _cos_cutoff(dist, hard_cutoff)[:, None]  # (P, n_dist)


def _build_sense_stacked(dist_pairs, coord_pairs, *, n_dist, sens_kwargs):
    """(P, 9*n_dist) stacked sensitivities, exactly as the torch forward builds them."""
    P = dist_pairs.shape[0]
    sense_vals = _sensitivity(dist_pairs, n_dist=n_dist, **sens_kwargs)
    rhats = coord_pairs / dist_pairs[:, None]
    sense_vec = (sense_vals[:, None, :] * rhats[:, :, None]).reshape(P, 3 * n_dist)
    rhatsquad = rhats[:, :, None] * rhats[:, None, :]
    rhatsquad = (rhatsquad + jnp.swapaxes(rhatsquad, 1, 2)) / 2.0
    tr = jnp.trace(rhatsquad, axis1=1, axis2=2) / 3.0
    rhatsquad = rhatsquad - tr[:, None, None] * jnp.eye(3, dtype=jnp.float32)[None]
    rhatsqflat = rhatsquad.reshape(P, 9)[:, np.array([0, 1, 2, 4, 5])]
    sense_quad = (sense_vals[:, None, :] * rhatsqflat[:, :, None]).reshape(P, 5 * n_dist)
    return jnp.concatenate([sense_vals, sense_vec, sense_quad], axis=1)


# ----------------------------------------------------------------------------
# Pallas kernel
# grid = (atom_tiles [parallel], pair_chunks [arbitrary/reduction])
# ----------------------------------------------------------------------------
def _interact_quad_kernel(
    # scalar prefetch (SMEM): per-atom-tile pair-segment metadata
    chunk_lo_ref,   # (n_tiles,) int32  first pair-chunk index of the tile's segment
    nchunk_ref,     # (n_tiles,) int32  number of pair chunks in the tile's segment
    # per-pair-chunk streams
    pf_ref,         # (1, PC)  int32    pair_first (sorted), sentinel = A_pad for padding
    dist_ref,       # (PC, 1)  f32
    coef_ref,       # (PC, 9)  f32      cutoff * [1, rhat(3), traceless-quad(5)]
    gfeat_ref,      # (PC, F)  f32      in_features[pair_second] (sorted)
    # per-atom-tile input
    feat_ref,       # (TA, F)  f32
    # resident parameters / small constants (grid-invariant)
    w_ref,          # (n_dist*F, nf_out)    reshaped int_weights
    swt_ref,        # (F, nf_out)           self-interaction weight^T
    sb_ref,         # (1, nf_out)
    vs_ref,         # (1, nf_out)           vecscales
    qs_ref,         # (1, nf_out)           quadscales
    invmu_ref,      # (1, n_dist)
    rs_ref,         # (n_dist, n_dist*F)    indicator: repeat gauss along F
    tf_ref,         # (F, n_dist*F)         indicator: tile features along n_dist
    rc_ref,         # (9, 9*nf_out)         indicator: repeat coef along nf_out
    to_ref,         # (nf_out, 9*nf_out)    indicator: tile MW along 9
    # output
    o_ref,          # (TA, nf_out)
    # scratch
    acc_ref,        # (TA, 9*nf_out) f32 accumulator
    *,
    tile_atoms,
    nf_out,
    neg_half_inv_sig2,
    cusp_reg,
):
    i = pl.program_id(0)           # atom tile
    j = pl.program_id(1)           # pair chunk (reduction axis)

    @pl.when(j == 0)
    def _init():
        acc_ref[...] = jnp.zeros_like(acc_ref)

    # Skip overflow chunks (tiles whose segment has fewer chunks than the grid max).
    @pl.when(j < nchunk_ref[i])
    def _accumulate():
        # ---- per-pair sensitivity Gaussians (exp on the EUP, hidden under matmuls)
        inv_d = 1.0 / dist_ref[...]                           # (PC, 1)
        diff = inv_d - invmu_ref[...]                         # (PC, nd)
        gauss = jnp.exp((diff * diff) * neg_half_inv_sig2)    # (PC, nd)

        # ---- SG[p, s*F+f] = gauss[p,s] * feat[p,f]   (indicator matmuls, no reshapes)
        g = gfeat_ref[...]                                    # (PC, F)
        sg = (jnp.dot(gauss, rs_ref[...], preferred_element_type=jnp.float32)
              * jnp.dot(g, tf_ref[...], preferred_element_type=jnp.float32))  # (PC, nd*F)

        # ---- MW[p,o] = sum_{s,f} gauss*feat*W : one K = nd*F matmul on the MXU
        mw = jnp.dot(sg, w_ref[...], preferred_element_type=jnp.float32)      # (PC, nf_out)

        # ---- M_all[p, k*nf_out+o] = coef[p,k] * MW[p,o]  (lane-dense, 9*nf_out wide)
        m_all = (jnp.dot(coef_ref[...], rc_ref[...], preferred_element_type=jnp.float32)
                 * jnp.dot(mw, to_ref[...], preferred_element_type=jnp.float32))

        # ---- envsum: local one-hot scatter-add of this chunk onto this atom tile
        pc = pf_ref.shape[1]
        atom_ids = i * tile_atoms + lax.broadcasted_iota(jnp.int32, (tile_atoms, pc), 0)
        onehot = jnp.where(atom_ids == pf_ref[...], 1.0, 0.0).astype(jnp.bfloat16)
        acc_ref[...] += jnp.dot(onehot, m_all.astype(jnp.bfloat16),
                                preferred_element_type=jnp.float32)

    @pl.when(j == pl.num_programs(1) - 1)
    def _finalize():
        parts = acc_ref[...]                                  # (TA, 9*nf_out) f32
        nfo = nf_out
        f_s = parts[:, 0:nfo]

        v1 = parts[:, 1 * nfo:2 * nfo]
        v2 = parts[:, 2 * nfo:3 * nfo]
        v3 = parts[:, 3 * nfo:4 * nfo]
        f_v = jnp.sqrt(v1 * v1 + v2 * v2 + v3 * v3 + cusp_reg) * vs_ref[...]

        q0 = parts[:, 4 * nfo:5 * nfo]
        q1 = parts[:, 5 * nfo:6 * nfo]
        q2 = parts[:, 6 * nfo:7 * nfo]
        q3 = parts[:, 7 * nfo:8 * nfo]
        q4 = parts[:, 8 * nfo:9 * nfo]
        quadfirst = q0 * q0 + q1 * q1 + q2 * q2 + q3 * q3 + q4 * q4
        quadsecond = q0 * q3
        f_q = jnp.sqrt(2.0 * (quadfirst + quadsecond) + cusp_reg) * qs_ref[...]

        f_self = (jnp.dot(feat_ref[...], swt_ref[...], preferred_element_type=jnp.float32)
                  + sb_ref[...])

        o_ref[...] = (f_s + f_v + f_q + f_self).astype(o_ref.dtype)


# ----------------------------------------------------------------------------
# Wrapper
# ----------------------------------------------------------------------------
def interact_layer_quad_forward(
    in_features, pair_first, pair_second, dist_pairs, coord_pairs, params,
    *, n_dist, cusp_reg, sens_kwargs, tile_atoms=256, pair_chunk=512,
):
    A, nf_in = in_features.shape
    P = int(dist_pairs.shape[0])
    nf_out = int(params["vecscales"].shape[0])
    mind_soft = float(sens_kwargs["mind_soft"])
    maxd_soft = float(sens_kwargs["maxd_soft"])
    hard_cutoff = float(sens_kwargs["hard_cutoff"])

    TA = int(tile_atoms)
    PC = int(pair_chunk)
    assert TA % 8 == 0 and PC % 128 == 0

    A_pad = ((A + TA - 1) // TA) * TA
    n_tiles = A_pad // TA
    P_pad = max(PC, ((P + PC - 1) // PC) * PC)

    # ---- host-side (concrete) segment metadata: pairs sorted by pair_first ----------
    # TODO(synk): the sort + segment offsets are computed on the host here; in a real
    #             pipeline they would be produced once per neighbour-list rebuild.
    pf_np = np.asarray(pair_first, dtype=np.int32)
    order = np.argsort(pf_np, kind="stable")
    pf_sorted = pf_np[order]
    pf_full = np.full((P_pad,), A_pad, dtype=np.int32)     # sentinel: matches no atom
    pf_full[:P] = pf_sorted

    tile_edges = np.arange(n_tiles + 1, dtype=np.int64) * TA
    seg_start = np.searchsorted(pf_sorted, tile_edges[:-1], side="left")
    seg_end = np.searchsorted(pf_sorted, tile_edges[1:], side="left")
    empty = seg_end <= seg_start
    nchunks_raw = (seg_end - 1) // PC - seg_start // PC + 1
    nchunks = np.where(empty, 0, nchunks_raw).astype(np.int32)
    chunk_lo = np.where(empty, 0, seg_start // PC).astype(np.int32)
    max_chunks = int(max(1, int(nchunks.max())))

    # ---- per-pair glue (kept small: only dist, 9 coefficients, gathered features) ----
    order_j = jnp.asarray(order)
    dist_s = jnp.asarray(dist_pairs, jnp.float32)[order_j]
    coord_s = jnp.asarray(coord_pairs, jnp.float32)[order_j]
    # TODO(synk): the pair_second feature gather stays in XLA; an in-kernel DMA gather
    #             would need per-pair descriptors and is not worth it at these sizes.
    gfeat_s = jnp.asarray(in_features, jnp.float32)[jnp.asarray(pair_second)[order_j]]

    rhats = coord_s / dist_s[:, None]
    rhsq = rhats[:, :, None] * rhats[:, None, :]
    rhsq = (rhsq + jnp.swapaxes(rhsq, 1, 2)) / 2.0
    tr = jnp.trace(rhsq, axis1=1, axis2=2) / 3.0
    rhsq = rhsq - tr[:, None, None] * jnp.eye(3, dtype=jnp.float32)[None]
    rhsqflat = rhsq.reshape(P, 9)[:, np.array([0, 1, 2, 4, 5])]
    cutoff = jnp.where(dist_s < hard_cutoff,
                       jnp.cos(jnp.pi * dist_s / (2.0 * hard_cutoff)) ** 2, 0.0)
    coef = jnp.concatenate(
        [jnp.ones((P, 1), jnp.float32), rhats, rhsqflat], axis=1) * cutoff[:, None]

    def pad_pairs(x, fill):
        if P_pad == P:
            return x
        pad = jnp.full((P_pad - P,) + x.shape[1:], fill, x.dtype)
        return jnp.concatenate([x, pad], axis=0)

    dist_col = pad_pairs(dist_s, 1.0).reshape(P_pad, 1)     # pad dist=1 avoids 1/0
    coef_p = pad_pairs(coef, 0.0)
    gfeat_p = pad_pairs(gfeat_s, 0.0)
    pf_row = jnp.asarray(pf_full).reshape(1, P_pad)

    feat_p = jnp.zeros((A_pad, nf_in), jnp.float32).at[:A].set(
        jnp.asarray(in_features, jnp.float32))

    # ---- parameters / constants --------------------------------------------------------
    w_rs = jnp.transpose(jnp.asarray(params["int_weights"], jnp.float32),
                         (0, 2, 1)).reshape(n_dist * nf_in, nf_out)
    self_wt = jnp.asarray(params["self_W"], jnp.float32).T
    self_b = jnp.asarray(params["self_b"], jnp.float32).reshape(1, nf_out)
    vecscales = jnp.asarray(params["vecscales"], jnp.float32).reshape(1, nf_out)
    quadscales = jnp.asarray(params["quadscales"], jnp.float32).reshape(1, nf_out)

    inv_mu = jnp.linspace(1.0 / maxd_soft, 1.0 / mind_soft, n_dist,
                          dtype=jnp.float32).reshape(1, n_dist)
    inv_sigma = (1.0 / mind_soft - 1.0 / maxd_soft) / n_dist
    neg_half_inv_sig2 = -0.5 / float(inv_sigma) ** 2

    f32 = np.float32
    r_s = jnp.asarray(np.kron(np.eye(n_dist, dtype=f32), np.ones((1, nf_in), f32)))
    t_f = jnp.asarray(np.tile(np.eye(nf_in, dtype=f32), (1, n_dist)))
    r_c = jnp.asarray(np.kron(np.eye(9, dtype=f32), np.ones((1, nf_out), f32)))
    t_o = jnp.asarray(np.tile(np.eye(nf_out, dtype=f32), (1, 9)))

    # ---- pallas call --------------------------------------------------------------------
    def pair_blk(i, j, lo, nc):
        # clamp so overflow chunks re-read a valid block (ignored via pl.when in-kernel)
        return lo[i] + jnp.minimum(j, jnp.maximum(nc[i] - 1, 0))

    in_specs = [
        pl.BlockSpec((1, PC), lambda i, j, lo, nc: (0, pair_blk(i, j, lo, nc))),       # pf
        pl.BlockSpec((PC, 1), lambda i, j, lo, nc: (pair_blk(i, j, lo, nc), 0)),       # dist
        pl.BlockSpec((PC, 9), lambda i, j, lo, nc: (pair_blk(i, j, lo, nc), 0)),       # coef
        pl.BlockSpec((PC, nf_in), lambda i, j, lo, nc: (pair_blk(i, j, lo, nc), 0)),   # gathered feats
        pl.BlockSpec((TA, nf_in), lambda i, j, lo, nc: (i, 0)),                        # in_features
        pl.BlockSpec((n_dist * nf_in, nf_out), lambda i, j, lo, nc: (0, 0)),           # w_rs
        pl.BlockSpec((nf_in, nf_out), lambda i, j, lo, nc: (0, 0)),                    # self W^T
        pl.BlockSpec((1, nf_out), lambda i, j, lo, nc: (0, 0)),                        # self b
        pl.BlockSpec((1, nf_out), lambda i, j, lo, nc: (0, 0)),                        # vecscales
        pl.BlockSpec((1, nf_out), lambda i, j, lo, nc: (0, 0)),                        # quadscales
        pl.BlockSpec((1, n_dist), lambda i, j, lo, nc: (0, 0)),                        # inv_mu
        pl.BlockSpec((n_dist, n_dist * nf_in), lambda i, j, lo, nc: (0, 0)),           # r_s
        pl.BlockSpec((nf_in, n_dist * nf_in), lambda i, j, lo, nc: (0, 0)),            # t_f
        pl.BlockSpec((9, 9 * nf_out), lambda i, j, lo, nc: (0, 0)),                    # r_c
        pl.BlockSpec((nf_out, 9 * nf_out), lambda i, j, lo, nc: (0, 0)),               # t_o
    ]

    kernel = functools.partial(
        _interact_quad_kernel,
        tile_atoms=TA, nf_out=nf_out,
        neg_half_inv_sig2=neg_half_inv_sig2, cusp_reg=float(cusp_reg),
    )

    grid_spec = pltpu.PrefetchScalarGridSpec(
        num_scalar_prefetch=2,
        grid=(n_tiles, max_chunks),
        in_specs=in_specs,
        out_specs=pl.BlockSpec((TA, nf_out), lambda i, j, lo, nc: (i, 0)),
        scratch_shapes=[pltpu.VMEM((TA, 9 * nf_out), jnp.float32)],
    )

    out = pl.pallas_call(
        kernel,
        out_shape=jax.ShapeDtypeStruct((A_pad, nf_out), jnp.float32),
        grid_spec=grid_spec,
        compiler_params=pltpu.CompilerParams(
            dimension_semantics=("parallel", "arbitrary")),
    )(jnp.asarray(chunk_lo), jnp.asarray(nchunks),
      pf_row, dist_col, coef_p, gfeat_p, feat_p,
      w_rs, self_wt, self_b, vecscales, quadscales,
      inv_mu, r_s, t_f, r_c, t_o)

    return out[:A]


# ----------------------------------------------------------------------------
# Pure-JAX reference (mirrors the torch forward exactly, scatter-add envsum)
# ----------------------------------------------------------------------------
def reference_forward(in_features, pair_first, pair_second, dist_pairs, coord_pairs,
                      params, *, n_dist, cusp_reg, sens_kwargs):
    A, nf_in = in_features.shape
    nf_out = params["vecscales"].shape[0]
    prec = jax.lax.Precision.HIGHEST

    sense_stacked = _build_sense_stacked(
        dist_pairs, coord_pairs, n_dist=n_dist, sens_kwargs=sens_kwargs)
    gathered = in_features[pair_second]
    env = jnp.zeros((A, 9 * n_dist, nf_in), jnp.float32).at[pair_first].add(
        sense_stacked[:, :, None] * gathered[:, None, :])
    env = env.reshape(A, 9, n_dist * nf_in)

    W = jnp.transpose(params["int_weights"], (0, 2, 1)).reshape(n_dist * nf_in, nf_out)

    feat_s = jnp.dot(env[:, 0], W, precision=prec)

    vec = jnp.einsum("akd,do->ako", env[:, 1:4], W, precision=prec)
    feat_vec = jnp.sqrt((vec ** 2).sum(axis=1) + cusp_reg) * params["vecscales"][None, :]

    quad = jnp.einsum("akd,do->ako", env[:, 4:9], W, precision=prec)
    quadfirst = (quad ** 2).sum(axis=1)
    quadsecond = quad[:, 0] * quad[:, 3]
    feat_quad = jnp.sqrt(2.0 * (quadfirst + quadsecond) + cusp_reg) * params["quadscales"][None, :]

    self_part = jnp.dot(in_features, params["self_W"].T, precision=prec) + params["self_b"][None, :]
    return feat_s + feat_vec + feat_quad + self_part


# ----------------------------------------------------------------------------
# Main
# ----------------------------------------------------------------------------
if __name__ == "__main__":
    # Module hyper-parameters (small demo shapes).
    nf_in, nf_out, n_dist = 16, 16, 8
    mind_soft, maxd_soft, hard_cutoff = 0.85, 5.0, 5.5
    cusp_reg = 1e-30
    n_atoms, n_pairs = 32, 300
    sens_kwargs = dict(mind_soft=mind_soft, maxd_soft=maxd_soft, hard_cutoff=hard_cutoff)

    key = jax.random.PRNGKey(0)
    k = jax.random.split(key, 10)

    xavier_std_int = (2.0 / (nf_in + nf_out)) ** 0.5
    params = dict(
        int_weights=xavier_std_int * jax.random.normal(k[0], (n_dist, nf_out, nf_in), jnp.float32),
        self_W=xavier_std_int * jax.random.normal(k[1], (nf_out, nf_in), jnp.float32),
        self_b=0.1 * jax.random.normal(k[2], (nf_out,), jnp.float32),
        vecscales=jax.random.normal(k[3], (nf_out,), jnp.float32),
        quadscales=jax.random.normal(k[4], (nf_out,), jnp.float32),
    )

    in_features = jax.random.normal(k[5], (n_atoms, nf_in), jnp.float32)
    pair_first = jax.random.randint(k[6], (n_pairs,), 0, n_atoms, jnp.int32)
    pair_second = jax.random.randint(k[7], (n_pairs,), 0, n_atoms, jnp.int32)
    dirs = jax.random.normal(k[8], (n_pairs, 3), jnp.float32)
    dirs = dirs / jnp.linalg.norm(dirs, axis=1, keepdims=True)
    dist_pairs = jax.random.uniform(k[9], (n_pairs,), jnp.float32, 1.2, 4.8)
    coord_pairs = dirs * dist_pairs[:, None]

    # Small tiles for the demo so multiple atom tiles and pair chunks are exercised;
    # production defaults are tile_atoms=256, pair_chunk=512.
    out = interact_layer_quad_forward(
        in_features, pair_first, pair_second, dist_pairs, coord_pairs, params,
        n_dist=n_dist, cusp_reg=cusp_reg, sens_kwargs=sens_kwargs,
        tile_atoms=8, pair_chunk=128,
    )
    out = jax.block_until_ready(out)

    ref = reference_forward(
        in_features, pair_first, pair_second, dist_pairs, coord_pairs, params,
        n_dist=n_dist, cusp_reg=cusp_reg, sens_kwargs=sens_kwargs,
    )

    assert out.shape == (n_atoms, nf_out)
    assert bool(jnp.all(jnp.isfinite(out)))
    max_err = float(jnp.max(jnp.abs(out - ref)))
    # bf16 operands feed the big K=P MXU contraction (f32 accumulation) -> loosened tol.
    assert bool(jnp.allclose(out, ref, rtol=2e-2, atol=2e-2)), max_err
    print("KERNEL_OK")
</pallas_src>

<mosaic_0001>
module attributes {stable_mosaic.version = 11 : i64} {
  func.func @_interact_quad_kernel(%arg0: i32, %arg1: i32, %arg2: memref<4xi32, #tpu.memory_space<smem>>, %arg3: memref<4xi32, #tpu.memory_space<smem>>, %arg4: memref<1x128xi32, #tpu.memory_space<vmem>>, %arg5: memref<128x1xf32, #tpu.memory_space<vmem>>, %arg6: memref<128x9xf32, #tpu.memory_space<vmem>>, %arg7: memref<128x16xf32, #tpu.memory_space<vmem>>, %arg8: memref<8x16xf32, #tpu.memory_space<vmem>>, %arg9: memref<128x16xf32, #tpu.memory_space<vmem>>, %arg10: memref<16x16xf32, #tpu.memory_space<vmem>>, %arg11: memref<1x16xf32, #tpu.memory_space<vmem>>, %arg12: memref<1x16xf32, #tpu.memory_space<vmem>>, %arg13: memref<1x16xf32, #tpu.memory_space<vmem>>, %arg14: memref<1x8xf32, #tpu.memory_space<vmem>>, %arg15: memref<8x128xf32, #tpu.memory_space<vmem>>, %arg16: memref<16x128xf32, #tpu.memory_space<vmem>>, %arg17: memref<9x144xf32, #tpu.memory_space<vmem>>, %arg18: memref<16x144xf32, #tpu.memory_space<vmem>>, %arg19: memref<8x16xf32, #tpu.memory_space<vmem>>, %arg20: memref<8x144xf32, #tpu.memory_space<vmem>>) attributes {dimension_semantics = [#tpu.dimension_semantics<parallel>, #tpu.dimension_semantics<arbitrary>], iteration_bounds = array<i64: 4, 2>, scalar_prefetch = 2 : i64, scratch_operands = 1 : i64, tpu.core_type = #tpu.core_type<tc>, window_params = [{transform_indices = @transform_0, window_bounds = array<i64: 1, 128>}, {transform_indices = @transform_1, window_bounds = array<i64: 128, 1>}, {transform_indices = @transform_2, window_bounds = array<i64: 128, 9>}, {transform_indices = @transform_3, window_bounds = array<i64: 128, 16>}, {transform_indices = @transform_4, window_bounds = array<i64: 8, 16>}, {pipeline_mode = #tpu.pipeline_mode<synchronous>, transform_indices = @transform_5, window_bounds = array<i64: 128, 16>}, {pipeline_mode = #tpu.pipeline_mode<synchronous>, transform_indices = @transform_6, window_bounds = array<i64: 16, 16>}, {pipeline_mode = #tpu.pipeline_mode<synchronous>, transform_indices = @transform_7, window_bounds = array<i64: 1, 16>}, {pipeline_mode = #tpu.pipeline_mode<synchronous>, transform_indices = @transform_8, window_bounds = array<i64: 1, 16>}, {pipeline_mode = #tpu.pipeline_mode<synchronous>, transform_indices = @transform_9, window_bounds = array<i64: 1, 16>}, {pipeline_mode = #tpu.pipeline_mode<synchronous>, transform_indices = @transform_10, window_bounds = array<i64: 1, 8>}, {pipeline_mode = #tpu.pipeline_mode<synchronous>, transform_indices = @transform_11, window_bounds = array<i64: 8, 128>}, {pipeline_mode = #tpu.pipeline_mode<synchronous>, transform_indices = @transform_12, window_bounds = array<i64: 16, 128>}, {pipeline_mode = #tpu.pipeline_mode<synchronous>, transform_indices = @transform_13, window_bounds = array<i64: 9, 144>}, {pipeline_mode = #tpu.pipeline_mode<synchronous>, transform_indices = @transform_14, window_bounds = array<i64: 16, 144>}, {transform_indices = @transform_15, window_bounds = array<i64: 8, 16>}]} {
    %c0_i32 = arith.constant 0 : i32
    %0 = arith.cmpi eq, %arg1, %c0_i32 : i32
    %1 = arith.extui %0 : i1 to i32
    %c0_i32_0 = arith.constant 0 : i32
    %2 = arith.cmpi ne, %1, %c0_i32_0 : i32
    scf.if %2 {
      %cst = arith.constant 0.000000e+00 : f32
      %11 = vector.broadcast %cst : f32 to vector<8x144xf32>
      %c0 = arith.constant 0 : index
      %c0_3 = arith.constant 0 : index
      %12 = vector.load %arg20[%c0, %c0_3] : memref<8x144xf32, #tpu.memory_space<vmem>>, vector<8x144xf32>
      tpu.vector_store %arg20[%c0, %c0_3], %11 {strides = array<i32>} : memref<8x144xf32, #tpu.memory_space<vmem>>, vector<8x144xf32>,
    } else {
    }
    %3 = arith.index_cast %arg0 : i32 to index
    %4 = memref.load %arg3[%3] : memref<4xi32, #tpu.memory_space<smem>>
    %5 = arith.cmpi slt, %arg1, %4 : i32
    %6 = arith.extui %5 : i1 to i32
    %c0_i32_1 = arith.constant 0 : i32
    %7 = arith.cmpi ne, %6, %c0_i32_1 : i32
    scf.if %7 {
      %c0 = arith.constant 0 : index
      %c0_3 = arith.constant 0 : index
      %11 = vector.load %arg5[%c0, %c0_3] : memref<128x1xf32, #tpu.memory_space<vmem>>, vector<128x1xf32>
      %cst = arith.constant 1.000000e+00 : f32
      %12 = vector.broadcast %cst : f32 to vector<128x1xf32>
      %13 = arith.divf %12, %11 : vector<128x1xf32>
      %c0_4 = arith.constant 0 : index
      %c0_5 = arith.constant 0 : index
      %14 = vector.load %arg14[%c0_4, %c0_5] : memref<1x8xf32, #tpu.memory_space<vmem>>, vector<1x8xf32>
      %15 = vector.broadcast %13 : vector<128x1xf32> to vector<128x8xf32>
      %16 = vector.broadcast %14 : vector<1x8xf32> to vector<128x8xf32>
      %17 = arith.subf %15, %16 : vector<128x8xf32>
      %18 = arith.mulf %17, %17 : vector<128x8xf32>
      %cst_6 = arith.constant -33.5607491 : f32
      %19 = vector.broadcast %cst_6 : f32 to vector<128x8xf32>
      %20 = arith.mulf %18, %19 : vector<128x8xf32>
      %21 = math.exp %20 : vector<128x8xf32>
      %c0_7 = arith.constant 0 : index
      %c0_8 = arith.constant 0 : index
      %22 = vector.load %arg7[%c0_7, %c0_8] : memref<128x16xf32, #tpu.memory_space<vmem>>, vector<128x16xf32>
      %c0_9 = arith.constant 0 : index
      %c0_10 = arith.constant 0 : index
      %23 = vector.load %arg15[%c0_9, %c0_10] : memref<8x128xf32, #tpu.memory_space<vmem>>, vector<8x128xf32>
      %cst_11 = arith.constant dense<0.000000e+00> : vector<128x128xf32>
      %24 = tpu.matmul %21, %23, %cst_11 {dimension_numbers = #tpu.dot_dimension_numbers<[1], [0], [0], [1], [0, 0, 1, 1], [], []>} : vector<128x8xf32>, vector<8x128xf32>, vector<128x128xf32> -> vector<128x128xf32>
      %c0_12 = arith.constant 0 : index
      %c0_13 = arith.constant 0 : index
      %25 = vector.load %arg16[%c0_12, %c0_13] : memref<16x128xf32, #tpu.memory_space<vmem>>, vector<16x128xf32>
      %cst_14 = arith.constant dense<0.000000e+00> : vector<128x128xf32>
      %26 = tpu.matmul %22, %25, %cst_14 {dimension_numbers = #tpu.dot_dimension_numbers<[1], [0], [0], [1], [0, 0, 1, 1], [], []>} : vector<128x16xf32>, vector<16x128xf32>, vector<128x128xf32> -> vector<128x128xf32>
      %27 = arith.mulf %24, %26 : vector<128x128xf32>
      %c0_15 = arith.constant 0 : index
      %c0_16 = arith.constant 0 : index
      %28 = vector.load %arg9[%c0_15, %c0_16] : memref<128x16xf32, #tpu.memory_space<vmem>>, vector<128x16xf32>
      %cst_17 = arith.constant dense<0.000000e+00> : vector<128x16xf32>
      %29 = tpu.matmul %27, %28, %cst_17 {dimension_numbers = #tpu.dot_dimension_numbers<[1], [0], [0], [1], [0, 0, 1, 1], [], []>} : vector<128x128xf32>, vector<128x16xf32>, vector<128x16xf32> -> vector<128x16xf32>
      %c0_18 = arith.constant 0 : index
      %c0_19 = arith.constant 0 : index
      %30 = vector.load %arg6[%c0_18, %c0_19] : memref<128x9xf32, #tpu.memory_space<vmem>>, vector<128x9xf32>
      %c0_20 = arith.constant 0 : index
      %c0_21 = arith.constant 0 : index
      %31 = vector.load %arg17[%c0_20, %c0_21] : memref<9x144xf32, #tpu.memory_space<vmem>>, vector<9x144xf32>
      %cst_22 = arith.constant dense<0.000000e+00> : vector<128x144xf32>
      %32 = tpu.matmul %30, %31, %cst_22 {dimension_numbers = #tpu.dot_dimension_numbers<[1], [0], [0], [1], [0, 0, 1, 1], [], []>} : vector<128x9xf32>, vector<9x144xf32>, vector<128x144xf32> -> vector<128x144xf32>
      %c0_23 = arith.constant 0 : index
      %c0_24 = arith.constant 0 : index
      %33 = vector.load %arg18[%c0_23, %c0_24] : memref<16x144xf32, #tpu.memory_space<vmem>>, vector<16x144xf32>
      %cst_25 = arith.constant dense<0.000000e+00> : vector<128x144xf32>
      %34 = tpu.matmul %29, %33, %cst_25 {dimension_numbers = #tpu.dot_dimension_numbers<[1], [0], [0], [1], [0, 0, 1, 1], [], []>} : vector<128x16xf32>, vector<16x144xf32>, vector<128x144xf32> -> vector<128x144xf32>
      %35 = arith.mulf %32, %34 : vector<128x144xf32>
      %c8_i32 = arith.constant 8 : i32
      %36 = arith.muli %arg0, %c8_i32 : i32
      %37 = tpu.iota {dimensions = array<i32: 0>} : vector<8x128xi32>
      %38 = vector.broadcast %36 : i32 to vector<8x128xi32>
      %39 = arith.addi %38, %37 : vector<8x128xi32>
      %c0_26 = arith.constant 0 : index
      %c0_27 = arith.constant 0 : index
      %40 = vector.load %arg4[%c0_26, %c0_27] : memref<1x128xi32, #tpu.memory_space<vmem>>, vector<1x128xi32>
      %41 = vector.broadcast %40 : vector<1x128xi32> to vector<8x128xi32>
      %42 = arith.cmpi eq, %39, %41 : vector<8x128xi32>
      %cst_28 = arith.constant 1.000000e+00 : f32
      %cst_29 = arith.constant 0.000000e+00 : f32
      %43 = vector.broadcast %cst_28 : f32 to vector<8x128xf32>
      %44 = vector.broadcast %cst_29 : f32 to vector<8x128xf32>
      %45 = arith.select %42, %43, %44 : vector<8x128xi1>, vector<8x128xf32>
      %46 = arith.truncf %45 : vector<8x128xf32> to vector<8x128xbf16>
      %c0_30 = arith.constant 0 : index
      %c0_31 = arith.constant 0 : index
      %47 = vector.load %arg20[%c0_30, %c0_31] : memref<8x144xf32, #tpu.memory_space<vmem>>, vector<8x144xf32>
      %48 = arith.truncf %35 : vector<128x144xf32> to vector<128x144xbf16>
      %cst_32 = arith.constant dense<0.000000e+00> : vector<8x144xf32>
      %49 = tpu.matmul %46, %48, %cst_32 {dimension_numbers = #tpu.dot_dimension_numbers<[1], [0], [0], [1], [0, 0, 1, 1], [], []>} : vector<8x128xbf16>, vector<128x144xbf16>, vector<8x144xf32> -> vector<8x144xf32>
      %50 = arith.addf %47, %49 : vector<8x144xf32>
      %c0_33 = arith.constant 0 : index
      %c0_34 = arith.constant 0 : index
      %51 = vector.load %arg20[%c0_33, %c0_34] : memref<8x144xf32, #tpu.memory_space<vmem>>, vector<8x144xf32>
      tpu.vector_store %arg20[%c0_33, %c0_34], %50 {strides = array<i32>} : memref<8x144xf32, #tpu.memory_space<vmem>>, vector<8x144xf32>,
    } else {
    }
    %c1_i32 = arith.constant 1 : i32
    %8 = arith.cmpi eq, %arg1, %c1_i32 : i32
    %9 = arith.extui %8 : i1 to i32
    %c0_i32_2 = arith.constant 0 : i32
    %10 = arith.cmpi ne, %9, %c0_i32_2 : i32
    scf.if %10 {
      %c0 = arith.constant 0 : index
      %c0_3 = arith.constant 0 : index
      %11 = vector.load %arg20[%c0, %c0_3] : memref<8x144xf32, #tpu.memory_space<vmem>>, vector<8x144xf32>
      %12 = vector.extract_strided_slice %11 {offsets = [0, 0], sizes = [8, 16], strides = [1, 1]} : vector<8x144xf32> to vector<8x16xf32>
      %13 = vector.extract_strided_slice %11 {offsets = [0, 16], sizes = [8, 16], strides = [1, 1]} : vector<8x144xf32> to vector<8x16xf32>
      %14 = vector.extract_strided_slice %11 {offsets = [0, 32], sizes = [8, 16], strides = [1, 1]} : vector<8x144xf32> to vector<8x16xf32>
      %15 = vector.extract_strided_slice %11 {offsets = [0, 48], sizes = [8, 16], strides = [1, 1]} : vector<8x144xf32> to vector<8x16xf32>
      %16 = arith.mulf %13, %13 : vector<8x16xf32>
      %17 = arith.mulf %14, %14 : vector<8x16xf32>
      %18 = arith.addf %16, %17 : vector<8x16xf32>
      %19 = arith.mulf %15, %15 : vector<8x16xf32>
      %20 = arith.addf %18, %19 : vector<8x16xf32>
      %cst = arith.constant 1.000000e-30 : f32
      %21 = vector.broadcast %cst : f32 to vector<8x16xf32>
      %22 = arith.addf %20, %21 : vector<8x16xf32>
      %23 = math.sqrt %22 : vector<8x16xf32>
      %c0_4 = arith.constant 0 : index
      %c0_5 = arith.constant 0 : index
      %24 = vector.load %arg12[%c0_4, %c0_5] : memref<1x16xf32, #tpu.memory_space<vmem>>, vector<1x16xf32>
      %25 = vector.broadcast %24 : vector<1x16xf32> to vector<8x16xf32>
      %26 = arith.mulf %23, %25 : vector<8x16xf32>
      %27 = vector.extract_strided_slice %11 {offsets = [0, 64], sizes = [8, 16], strides = [1, 1]} : vector<8x144xf32> to vector<8x16xf32>
      %28 = vector.extract_strided_slice %11 {offsets = [0, 80], sizes = [8, 16], strides = [1, 1]} : vector<8x144xf32> to vector<8x16xf32>
      %29 = vector.extract_strided_slice %11 {offsets = [0, 96], sizes = [8, 16], strides = [1, 1]} : vector<8x144xf32> to vector<8x16xf32>
      %30 = vector.extract_strided_slice %11 {offsets = [0, 112], sizes = [8, 16], strides = [1, 1]} : vector<8x144xf32> to vector<8x16xf32>
      %31 = vector.extract_strided_slice %11 {offsets = [0, 128], sizes = [8, 16], strides = [1, 1]} : vector<8x144xf32> to vector<8x16xf32>
      %32 = arith.mulf %27, %27 : vector<8x16xf32>
      %33 = arith.mulf %28, %28 : vector<8x16xf32>
      %34 = arith.addf %32, %33 : vector<8x16xf32>
      %35 = arith.mulf %29, %29 : vector<8x16xf32>
      %36 = arith.addf %34, %35 : vector<8x16xf32>
      %37 = arith.mulf %30, %30 : vector<8x16xf32>
      %38 = arith.addf %36, %37 : vector<8x16xf32>
      %39 = arith.mulf %31, %31 : vector<8x16xf32>
      %40 = arith.addf %38, %39 : vector<8x16xf32>
      %41 = arith.mulf %27, %30 : vector<8x16xf32>
      %42 = arith.addf %40, %41 : vector<8x16xf32>
      %cst_6 = arith.constant 2.000000e+00 : f32
      %43 = vector.broadcast %cst_6 : f32 to vector<8x16xf32>
      %44 = arith.mulf %43, %42 : vector<8x16xf32>
      %cst_7 = arith.constant 1.000000e-30 : f32
      %45 = vector.broadcast %cst_7 : f32 to vector<8x16xf32>
      %46 = arith.addf %44, %45 : vector<8x16xf32>
      %47 = math.sqrt %46 : vector<8x16xf32>
      %c0_8 = arith.constant 0 : index
      %c0_9 = arith.constant 0 : index
      %48 = vector.load %arg13[%c0_8, %c0_9] : memref<1x16xf32, #tpu.memory_space<vmem>>, vector<1x16xf32>
      %49 = vector.broadcast %48 : vector<1x16xf32> to vector<8x16xf32>
      %50 = arith.mulf %47, %49 : vector<8x16xf32>
      %c0_10 = arith.constant 0 : index
      %c0_11 = arith.constant 0 : index
      %51 = vector.load %arg8[%c0_10, %c0_11] : memref<8x16xf32, #tpu.memory_space<vmem>>, vector<8x16xf32>
      %c0_12 = arith.constant 0 : index
      %c0_13 = arith.constant 0 : index
      %52 = vector.load %arg10[%c0_12, %c0_13] : memref<16x16xf32, #tpu.memory_space<vmem>>, vector<16x16xf32>
      %cst_14 = arith.constant dense<0.000000e+00> : vector<8x16xf32>
      %53 = tpu.matmul %51, %52, %cst_14 {dimension_numbers = #tpu.dot_dimension_numbers<[1], [0], [0], [1], [0, 0, 1, 1], [], []>} : vector<8x16xf32>, vector<16x16xf32>, vector<8x16xf32> -> vector<8x16xf32>
      %c0_15 = arith.constant 0 : index
      %c0_16 = arith.constant 0 : index
      %54 = vector.load %arg11[%c0_15, %c0_16] : memref<1x16xf32, #tpu.memory_space<vmem>>, vector<1x16xf32>
      %55 = vector.broadcast %54 : vector<1x16xf32> to vector<8x16xf32>
      %56 = arith.addf %53, %55 : vector<8x16xf32>
      %57 = arith.addf %12, %26 : vector<8x16xf32>
      %58 = arith.addf %57, %50 : vector<8x16xf32>
      %59 = arith.addf %58, %56 : vector<8x16xf32>
      %c0_17 = arith.constant 0 : index
      %c0_18 = arith.constant 0 : index
      %60 = vector.load %arg19[%c0_17, %c0_18] : memref<8x16xf32, #tpu.memory_space<vmem>>, vector<8x16xf32>
      tpu.vector_store %arg19[%c0_17, %c0_18], %59 {strides = array<i32>} : memref<8x16xf32, #tpu.memory_space<vmem>>, vector<8x16xf32>,
    } else {
    }
    return
  }
  func.func @transform_0(%arg0: i32, %arg1: i32, %arg2: memref<4xi32, #tpu.memory_space<smem>>, %arg3: memref<4xi32, #tpu.memory_space<smem>>) -> (i32, i32) {
    %0 = arith.index_cast %arg0 : i32 to index
    %1 = memref.load %arg2[%0] : memref<4xi32, #tpu.memory_space<smem>>
    %2 = arith.index_cast %arg0 : i32 to index
    %3 = memref.load %arg3[%2] : memref<4xi32, #tpu.memory_space<smem>>
    %c1_i32 = arith.constant 1 : i32
    %4 = arith.subi %3, %c1_i32 : i32
    %c0_i32 = arith.constant 0 : i32
    %5 = arith.maxsi %4, %c0_i32 : i32
    %6 = arith.minsi %arg1, %5 : i32
    %7 = arith.addi %1, %6 : i32
    %c0_i32_0 = arith.constant 0 : i32
    %c0_i32_1 = arith.constant 0 : i32
    return %c0_i32_0, %7 : i32, i32
  }
  func.func @transform_1(%arg0: i32, %arg1: i32, %arg2: memref<4xi32, #tpu.memory_space<smem>>, %arg3: memref<4xi32, #tpu.memory_space<smem>>) -> (i32, i32) {
    %0 = arith.index_cast %arg0 : i32 to index
    %1 = memref.load %arg2[%0] : memref<4xi32, #tpu.memory_space<smem>>
    %2 = arith.index_cast %arg0 : i32 to index
    %3 = memref.load %arg3[%2] : memref<4xi32, #tpu.memory_space<smem>>
    %c1_i32 = arith.constant 1 : i32
    %4 = arith.subi %3, %c1_i32 : i32
    %c0_i32 = arith.constant 0 : i32
    %5 = arith.maxsi %4, %c0_i32 : i32
    %6 = arith.minsi %arg1, %5 : i32
    %7 = arith.addi %1, %6 : i32
    %c0_i32_0 = arith.constant 0 : i32
    %c0_i32_1 = arith.constant 0 : i32
    return %7, %c0_i32_0 : i32, i32
  }
  func.func @transform_2(%arg0: i32, %arg1: i32, %arg2: memref<4xi32, #tpu.memory_space<smem>>, %arg3: memref<4xi32, #tpu.memory_space<smem>>) -> (i32, i32) {
    %0 = arith.index_cast %arg0 : i32 to index
    %1 = memref.load %arg2[%0] : memref<4xi32, #tpu.memory_space<smem>>
    %2 = arith.index_cast %arg0 : i32 to index
    %3 = memref.load %arg3[%2] : memref<4xi32, #tpu.memory_space<smem>>
    %c1_i32 = arith.constant 1 : i32
    %4 = arith.subi %3, %c1_i32 : i32
    %c0_i32 = arith.constant 0 : i32
    %5 = arith.maxsi %4, %c0_i32 : i32
    %6 = arith.minsi %arg1, %5 : i32
    %7 = arith.addi %1, %6 : i32
    %c0_i32_0 = arith.constant 0 : i32
    %c0_i32_1 = arith.constant 0 : i32
    return %7, %c0_i32_0 : i32, i32
  }
  func.func @transform_3(%arg0: i32, %arg1: i32, %arg2: memref<4xi32, #tpu.memory_space<smem>>, %arg3: memref<4xi32, #tpu.memory_space<smem>>) -> (i32, i32) {
    %0 = arith.index_cast %arg0 : i32 to index
    %1 = memref.load %arg2[%0] : memref<4xi32, #tpu.memory_space<smem>>
    %2 = arith.index_cast %arg0 : i32 to index
    %3 = memref.load %arg3[%2] : memref<4xi32, #tpu.memory_space<smem>>
    %c1_i32 = arith.constant 1 : i32
    %4 = arith.subi %3, %c1_i32 : i32
    %c0_i32 = arith.constant 0 : i32
    %5 = arith.maxsi %4, %c0_i32 : i32
    %6 = arith.minsi %arg1, %5 : i32
    %7 = arith.addi %1, %6 : i32
    %c0_i32_0 = arith.constant 0 : i32
    %c0_i32_1 = arith.constant 0 : i32
    return %7, %c0_i32_0 : i32, i32
  }
  func.func @transform_4(%arg0: i32, %arg1: i32, %arg2: memref<4xi32, #tpu.memory_space<smem>>, %arg3: memref<4xi32, #tpu.memory_space<smem>>) -> (i32, i32) {
    %c0_i32 = arith.constant 0 : i32
    %c0_i32_0 = arith.constant 0 : i32
    return %arg0, %c0_i32 : i32, i32
  }
  func.func @transform_5(%arg0: i32, %arg1: i32, %arg2: memref<4xi32, #tpu.memory_space<smem>>, %arg3: memref<4xi32, #tpu.memory_space<smem>>) -> (i32, i32) {
    %c0_i32 = arith.constant 0 : i32
    %c0_i32_0 = arith.constant 0 : i32
    %c0_i32_1 = arith.constant 0 : i32
    return %c0_i32, %c0_i32_0 : i32, i32
  }
  func.func @transform_6(%arg0: i32, %arg1: i32, %arg2: memref<4xi32, #tpu.memory_space<smem>>, %arg3: memref<4xi32, #tpu.memory_space<smem>>) -> (i32, i32) {
    %c0_i32 = arith.constant 0 : i32
    %c0_i32_0 = arith.constant 0 : i32
    %c0_i32_1 = arith.constant 0 : i32
    return %c0_i32, %c0_i32_0 : i32, i32
  }
  func.func @transform_7(%arg0: i32, %arg1: i32, %arg2: memref<4xi32, #tpu.memory_space<smem>>, %arg3: memref<4xi32, #tpu.memory_space<smem>>) -> (i32, i32) {
    %c0_i32 = arith.constant 0 : i32
    %c0_i32_0 = arith.constant 0 : i32
    %c0_i32_1 = arith.constant 0 : i32
    return %c0_i32, %c0_i32_0 : i32, i32
  }
  func.func @transform_8(%arg0: i32, %arg1: i32, %arg2: memref<4xi32, #tpu.memory_space<smem>>, %arg3: memref<4xi32, #tpu.memory_space<smem>>) -> (i32, i32) {
    %c0_i32 = arith.constant 0 : i32
    %c0_i32_0 = arith.constant 0 : i32
    %c0_i32_1 = arith.constant 0 : i32
    return %c0_i32, %c0_i32_0 : i32, i32
  }
  func.func @transform_9(%arg0: i32, %arg1: i32, %arg2: memref<4xi32, #tpu.memory_space<smem>>, %arg3: memref<4xi32, #tpu.memory_space<smem>>) -> (i32, i32) {
    %c0_i32 = arith.constant 0 : i32
    %c0_i32_0 = arith.constant 0 : i32
    %c0_i32_1 = arith.constant 0 : i32
    return %c0_i32, %c0_i32_0 : i32, i32
  }
  func.func @transform_10(%arg0: i32, %arg1: i32, %arg2: memref<4xi32, #tpu.memory_space<smem>>, %arg3: memref<4xi32, #tpu.memory_space<smem>>) -> (i32, i32) {
    %c0_i32 = arith.constant 0 : i32
    %c0_i32_0 = arith.constant 0 : i32
    %c0_i32_1 = arith.constant 0 : i32
    return %c0_i32, %c0_i32_0 : i32, i32
  }
  func.func @transform_11(%arg0: i32, %arg1: i32, %arg2: memref<4xi32, #tpu.memory_space<smem>>, %arg3: memref<4xi32, #tpu.memory_space<smem>>) -> (i32, i32) {
    %c0_i32 = arith.constant 0 : i32
    %c0_i32_0 = arith.constant 0 : i32
    %c0_i32_1 = arith.constant 0 : i32
    return %c0_i32, %c0_i32_0 : i32, i32
  }
  func.func @transform_12(%arg0: i32, %arg1: i32, %arg2: memref<4xi32, #tpu.memory_space<smem>>, %arg3: memref<4xi32, #tpu.memory_space<smem>>) -> (i32, i32) {
    %c0_i32 = arith.constant 0 : i32
    %c0_i32_0 = arith.constant 0 : i32
    %c0_i32_1 = arith.constant 0 : i32
    return %c0_i32, %c0_i32_0 : i32, i32
  }
  func.func @transform_13(%arg0: i32, %arg1: i32, %arg2: memref<4xi32, #tpu.memory_space<smem>>, %arg3: memref<4xi32, #tpu.memory_space<smem>>) -> (i32, i32) {
    %c0_i32 = arith.constant 0 : i32
    %c0_i32_0 = arith.constant 0 : i32
    %c0_i32_1 = arith.constant 0 : i32
    return %c0_i32, %c0_i32_0 : i32, i32
  }
  func.func @transform_14(%arg0: i32, %arg1: i32, %arg2: memref<4xi32, #tpu.memory_space<smem>>, %arg3: memref<4xi32, #tpu.memory_space<smem>>) -> (i32, i32) {
    %c0_i32 = arith.constant 0 : i32
    %c0_i32_0 = arith.constant 0 : i32
    %c0_i32_1 = arith.constant 0 : i32
    return %c0_i32, %c0_i32_0 : i32, i32
  }
  func.func @transform_15(%arg0: i32, %arg1: i32, %arg2: memref<4xi32, #tpu.memory_space<smem>>, %arg3: memref<4xi32, #tpu.memory_space<smem>>) -> (i32, i32) {
    %c0_i32 = arith.constant 0 : i32
    %c0_i32_0 = arith.constant 0 : i32
    return %arg0, %c0_i32 : i32, i32
  }
}

</mosaic_0001>

<llo_original>
// kernel: tpu_custom_call.1
$region0: #{tpu_custom_call.1}
  #allocation0 [shape = 'u32[]', space=smem, size = 0x4, offset = 0x4, fixed_abs, tag = 'smem constant byte address 0x4 - core index']
  #allocation1 [shape = 'u32[144,128]{1,0:T(1,128)}', space=vmem, size = 0x12000, scoped, tag = 'internal scratch']
  #allocation2 [shape = 'f32[8,144]{1,0:T(8,128)}', space=vmem, size = 0x2000, scoped, tag = 'scratch operand']
  #allocation3 [shape = 's32[1]{0}', space=sflag, size = 0x4, scoped, tag = 'scoped memory for tpu_custom_call.1']
  #allocation4 [shape = 'u8[512]{0}', space=smem, size = 0x200, scoped, tag = 'prefetched SMEM operand 0']
  #allocation5 [shape = 'u8[512]{0}', space=smem, size = 0x200, scoped, tag = 'prefetched SMEM operand 1']
  %s0 = inlined_call_operand.vmem [shape: s32[4], index: 0, kind: input, shape index: {}]
  %s1 = inlined_call_operand.vmem [shape: s32[4], index: 1, kind: input, shape index: {}]
  %s2 = inlined_call_operand.vmem [shape: s32[1,384], index: 2, kind: input, shape index: {}]
  %s3 = inlined_call_operand.vmem [shape: f32[384,1], index: 3, kind: input, shape index: {}]
  %s4 = inlined_call_operand.vmem [shape: f32[384,9], index: 4, kind: input, shape index: {}]
  %s5 = inlined_call_operand.vmem [shape: f32[384,16], index: 5, kind: input, shape index: {}]
  %s6 = inlined_call_operand.vmem [shape: f32[32,16], index: 6, kind: input, shape index: {}]
  %s7 = inlined_call_operand.vmem [shape: f32[128,16], index: 7, kind: input, shape index: {}]
  %s8 = inlined_call_operand.vmem [shape: f32[16,16], index: 8, kind: input, shape index: {}]
  %s9 = inlined_call_operand.vmem [shape: f32[1,16], index: 9, kind: input, shape index: {}]
  %s10 = inlined_call_operand.vmem [shape: f32[1,16], index: 10, kind: input, shape index: {}]
  %s11 = inlined_call_operand.vmem [shape: f32[1,16], index: 11, kind: input, shape index: {}]
  %s12 = inlined_call_operand.vmem [shape: f32[1,8], index: 12, kind: input, shape index: {}]
  %s13 = inlined_call_operand.vmem [shape: f32[8,128], index: 13, kind: input, shape index: {}]
  %s14 = inlined_call_operand.vmem [shape: f32[16,128], index: 14, kind: input, shape index: {}]
  %s15 = inlined_call_operand.vmem [shape: f32[9,144], index: 15, kind: input, shape index: {}]
  %s16 = inlined_call_operand.vmem [shape: f32[16,144], index: 16, kind: input, shape index: {}]
  %s17 = inlined_call_operand.vmem [shape: f32[32,16], index: 17, kind: output, shape index: {}]
  %s18 = sld [smem:[#allocation0]]
  $region105: #{tpu_custom_call.1} parent=0
    _
  %s20 = ssub.s32 1, %s18
  %s21 = scalar_select 0, %s20, %s18
  %s22 = sshll.u32 %s0, 4
  %s23 = int_to_ptr.vmem [resolvable:$true] %s22
  %25 = dma.vmem_to_smem %s23, 16, [#allocation4], [#allocation3]
  %s26 = sshll.u32 %s1, 4
  %s27 = int_to_ptr.vmem [resolvable:$true] %s26
  %29 = dma.vmem_to_smem %s27, 16, [#allocation5], [#allocation3]
  %30 = dma.done [#allocation3], 32
  %31 = sfence
  loop: start=0, step=1, limit=10
  $region2: #{tpu_custom_call.1} parent=0 // loop_pre_header
    _
  $region3: #{tpu_custom_call.1} parent=0 // loop_header
    %s33 = sphi 0, %s37
    %p34 = scmp.ge.s32.totalorder %s33, 10
    %s40 = sphi 0, %s52
    %s41 = sphi 0, %s48
    %s42 = sphi 0, %s40
    %s43 = sphi 0, %s41
    %s44 = sphi 0, %s42
    %s45 = sphi 0, %s43
    %s71 = sphi 0, %s73
    %s74 = sphi 0, %s71
    %s75 = sphi 0, %s74
    %s91 = sphi 0, %s75
    %s113 = sphi 0, %s115
    %s116 = sphi 0, %s113
    %s117 = sphi 0, %s116
    %s133 = sphi 0, %s117
    %s155 = sphi 0, %s157
    %s158 = sphi 0, %s155
    %s159 = sphi 0, %s158
    %s175 = sphi 0, %s159
    %s197 = sphi 0, %s199
    %s200 = sphi 0, %s197
    %s201 = sphi 0, %s200
    %s217 = sphi 0, %s201
    %s223 = sphi 0, %s225
    %s226 = sphi 0, %s223
    %s227 = sphi 0, %s226
    %s243 = sphi 0, %s227
    %s247 = sphi 0, %s247
    %s249 = sphi 0, %s247
    %s250 = sphi 0, %s249
    %s264 = sphi 0, %s250
    %s268 = sphi 0, %s268
    %s270 = sphi 0, %s268
    %s271 = sphi 0, %s270
    %s285 = sphi 0, %s271
    %s289 = sphi 0, %s289
    %s291 = sphi 0, %s289
    %s292 = sphi 0, %s291
    %s306 = sphi 0, %s292
    %s310 = sphi 0, %s310
    %s312 = sphi 0, %s310
    %s313 = sphi 0, %s312
    %s327 = sphi 0, %s313
    %s331 = sphi 0, %s331
    %s333 = sphi 0, %s331
    %s334 = sphi 0, %s333
    %s348 = sphi 0, %s334
    %s352 = sphi 0, %s352
    %s354 = sphi 0, %s352
    %s355 = sphi 0, %s354
    %s369 = sphi 0, %s355
    %s373 = sphi 0, %s373
    %s375 = sphi 0, %s373
    %s376 = sphi 0, %s375
    %s390 = sphi 0, %s376
    %s394 = sphi 0, %s394
    %s396 = sphi 0, %s394
    %s397 = sphi 0, %s396
    %s411 = sphi 0, %s397
    %s415 = sphi 0, %s415
    %s417 = sphi 0, %s415
    %s418 = sphi 0, %s417
    %s432 = sphi 0, %s418
    %s436 = sphi 0, %s436
    %s438 = sphi 0, %s436
    %s439 = sphi 0, %s438
    %s453 = sphi 0, %s439
    %s459 = sphi 0, %s461
    %s462 = sphi 0, %s459
    %s463 = sphi 0, %s462
    %s479 = sphi 0, %s463
  $region4: #{tpu_custom_call.1} parent=0 // loop_header_branch
    %36 = sbr.rel (%p34) target = $region8
  $region5: #{tpu_custom_call.1} parent=0 // loop_body
    %s38 = ssub.s32 %s33, 1
    %s39 = ssub.s32 %s33, 2
    %s46 = sadd.s32 1, %s41
    %p47 = scmp.ge.s32.totalorder %s46, 2
    %s48 = scalar_select %p47, 0, %s46
    %s49 = sadd.s32 1, %s40
    %s50 = scalar_select %p47, %s49, %s40
    %p51 = scmp.ge.s32.totalorder %s50, 4
    %s52 = scalar_select %p51, 0, %s50
    %s53 = sld [smem:[#allocation4 + %s40]]
    %s54 = sld [smem:[#allocation5 + %s40]]
    %s55 = ssub.s32 %s54, 1
    %p56 = scmp.gt.s32.totalorder %s55, 0
    %s57 = scalar_select %p56, %s55, 0
    %p58 = scmp.lt.s32.totalorder %s41, %s57
    %s59 = scalar_select %p58, %s41, %s57
    %s60 = sadd.s32 %s53, %s59
    %s61 = sld [smem:[#allocation4 + %s52]]
    %s62 = sld [smem:[#allocation5 + %s52]]
    %s63 = ssub.s32 %s62, 1
    %p64 = scmp.gt.s32.totalorder %s63, 0
    %s65 = scalar_select %p64, %s63, 0
    %p66 = scmp.lt.s32.totalorder %s48, %s65
    %s67 = scalar_select %p66, %s48, %s65
    %s68 = sadd.s32 %s61, %s67
    %s69 = ssub.s32 %s60, %s68
    %p70 = scmp.eq.s32.totalorder %s69, 0
    %s72 = sadd.s32 %s71, 1
    %s73 = scalar_select %p70, %s71, %s72
    %p76 = pneg %p70
    %p77 = scmp.eq.s32.totalorder %s33, 7
    %p78 = por %p76, %p77
    %p79 = scmp.ne.s32.totalorder %s71, %s74
    %p80 = scmp.eq.s32.totalorder %s33, 0
    %p81 = por %p79, %p80
    %p82 = scmp.ne.s32.totalorder %s71, %s74
    %p83 = scmp.eq.s32.totalorder %s38, 7
    %p84 = por %p82, %p83
    %p85 = scmp.ne.s32.totalorder %s74, %s75
    %p86 = scmp.eq.s32.totalorder %s38, 0
    %p87 = por %p85, %p86
    %p88 = scmp.ne.s32.totalorder %s74, %s75
    %p89 = scmp.eq.s32.totalorder %s39, 7
    %p90 = por %p88, %p89
    %p92 = scmp.ne.s32.totalorder %s75, %s91
    %p93 = scmp.eq.s32.totalorder %s39, 0
    %p94 = por %p92, %p93
    %s95 = sld [smem:[#allocation4 + %s40]]
    %s96 = sld [smem:[#allocation5 + %s40]]
    %s97 = ssub.s32 %s96, 1
    %p98 = scmp.gt.s32.totalorder %s97, 0
    %s99 = scalar_select %p98, %s97, 0
    %p100 = scmp.lt.s32.totalorder %s41, %s99
    %s101 = scalar_select %p100, %s41, %s99
    %s102 = sadd.s32 %s95, %s101
    %s103 = sld [smem:[#allocation4 + %s52]]
    %s104 = sld [smem:[#allocation5 + %s52]]
    %s105 = ssub.s32 %s104, 1
    %p106 = scmp.gt.s32.totalorder %s105, 0
    %s107 = scalar_select %p106, %s105, 0
    %p108 = scmp.lt.s32.totalorder %s48, %s107
    %s109 = scalar_select %p108, %s48, %s107
    %s110 = sadd.s32 %s103, %s109
    %s111 = ssub.s32 %s102, %s110
    %p112 = scmp.eq.s32.totalorder %s111, 0
    %s114 = sadd.s32 %s113, 1
    %s115 = scalar_select %p112, %s113, %s114
    %p118 = pneg %p112
    %p119 = scmp.eq.s32.totalorder %s33, 7
    %p120 = por %p118, %p119
    %p121 = scmp.ne.s32.totalorder %s113, %s116
    %p122 = scmp.eq.s32.totalorder %s33, 0
    %p123 = por %p121, %p122
    %p124 = scmp.ne.s32.totalorder %s113, %s116
    %p125 = scmp.eq.s32.totalorder %s38, 7
    %p126 = por %p124, %p125
    %p127 = scmp.ne.s32.totalorder %s116, %s117
    %p128 = scmp.eq.s32.totalorder %s38, 0
    %p129 = por %p127, %p128
    %p130 = scmp.ne.s32.totalorder %s116, %s117
    %p131 = scmp.eq.s32.totalorder %s39, 7
    %p132 = por %p130, %p131
    %p134 = scmp.ne.s32.totalorder %s117, %s133
    %p135 = scmp.eq.s32.totalorder %s39, 0
    %p136 = por %p134, %p135
    %s137 = sld [smem:[#allocation4 + %s40]]
    %s138 = sld [smem:[#allocation5 + %s40]]
    %s139 = ssub.s32 %s138, 1
    %p140 = scmp.gt.s32.totalorder %s139, 0
    %s141 = scalar_select %p140, %s139, 0
    %p142 = scmp.lt.s32.totalorder %s41, %s141
    %s143 = scalar_select %p142, %s41, %s141
    %s144 = sadd.s32 %s137, %s143
    %s145 = sld [smem:[#allocation4 + %s52]]
    %s146 = sld [smem:[#allocation5 + %s52]]
    %s147 = ssub.s32 %s146, 1
    %p148 = scmp.gt.s32.totalorder %s147, 0
    %s149 = scalar_select %p148, %s147, 0
    %p150 = scmp.lt.s32.totalorder %s48, %s149
    %s151 = scalar_select %p150, %s48, %s149
    %s152 = sadd.s32 %s145, %s151
    %s153 = ssub.s32 %s144, %s152
    %p154 = scmp.eq.s32.totalorder %s153, 0
    %s156 = sadd.s32 %s155, 1
    %s157 = scalar_select %p154, %s155, %s156
    %p160 = pneg %p154
    %p161 = scmp.eq.s32.totalorder %s33, 7
    %p162 = por %p160, %p161
    %p163 = scmp.ne.s32.totalorder %s155, %s158
    %p164 = scmp.eq.s32.totalorder %s33, 0
    %p165 = por %p163, %p164
    %p166 = scmp.ne.s32.totalorder %s155, %s158
    %p167 = scmp.eq.s32.totalorder %s38, 7
    %p168 = por %p166, %p167
    %p169 = scmp.ne.s32.totalorder %s158, %s159
    %p170 = scmp.eq.s32.totalorder %s38, 0
    %p171 = por %p169, %p170
    %p172 = scmp.ne.s32.totalorder %s158, %s159
    %p173 = scmp.eq.s32.totalorder %s39, 7
    %p174 = por %p172, %p173
    %p176 = scmp.ne.s32.totalorder %s159, %s175
    %p177 = scmp.eq.s32.totalorder %s39, 0
    %p178 = por %p176, %p177
    %s179 = sld [smem:[#allocation4 + %s40]]
    %s180 = sld [smem:[#allocation5 + %s40]]
    %s181 = ssub.s32 %s180, 1
    %p182 = scmp.gt.s32.totalorder %s181, 0
    %s183 = scalar_select %p182, %s181, 0
    %p184 = scmp.lt.s32.totalorder %s41, %s183
    %s185 = scalar_select %p184, %s41, %s183
    %s186 = sadd.s32 %s179, %s185
    %s187 = sld [smem:[#allocation4 + %s52]]
    %s188 = sld [smem:[#allocation5 + %s52]]
    %s189 = ssub.s32 %s188, 1
    %p190 = scmp.gt.s32.totalorder %s189, 0
    %s191 = scalar_select %p190, %s189, 0
    %p192 = scmp.lt.s32.totalorder %s48, %s191
    %s193 = scalar_select %p192, %s48, %s191
    %s194 = sadd.s32 %s187, %s193
    %s195 = ssub.s32 %s186, %s194
    %p196 = scmp.eq.s32.totalorder %s195, 0
    %s198 = sadd.s32 %s197, 1
    %s199 = scalar_select %p196, %s197, %s198
    %p202 = pneg %p196
    %p203 = scmp.eq.s32.totalorder %s33, 7
    %p204 = por %p202, %p203
    %p205 = scmp.ne.s32.totalorder %s197, %s200
    %p206 = scmp.eq.s32.totalorder %s33, 0
    %p207 = por %p205, %p206
    %p208 = scmp.ne.s32.totalorder %s197, %s200
    %p209 = scmp.eq.s32.totalorder %s38, 7
    %p210 = por %p208, %p209
    %p211 = scmp.ne.s32.totalorder %s200, %s201
    %p212 = scmp.eq.s32.totalorder %s38, 0
    %p213 = por %p211, %p212
    %p214 = scmp.ne.s32.totalorder %s200, %s201
    %p215 = scmp.eq.s32.totalorder %s39, 7
    %p216 = por %p214, %p215
    %p218 = scmp.ne.s32.totalorder %s201, %s217
    %p219 = scmp.eq.s32.totalorder %s39, 0
    %p220 = por %p218, %p219
    %s221 = ssub.s32 %s40, %s52
    %p222 = scmp.eq.s32.totalorder %s221, 0
    %s224 = sadd.s32 %s223, 1
    %s225 = scalar_select %p222, %s223, %s224
    %p228 = pneg %p222
    %p229 = scmp.eq.s32.totalorder %s33, 7
    %p230 = por %p228, %p229
    %p231 = scmp.ne.s32.totalorder %s223, %s226
    %p232 = scmp.eq.s32.totalorder %s33, 0
    %p233 = por %p231, %p232
    %p234 = scmp.ne.s32.totalorder %s223, %s226
    %p235 = scmp.eq.s32.totalorder %s38, 7
    %p236 = por %p234, %p235
    %p237 = scmp.ne.s32.totalorder %s226, %s227
    %p238 = scmp.eq.s32.totalorder %s38, 0
    %p239 = por %p237, %p238
    %p240 = scmp.ne.s32.totalorder %s226, %s227
    %p241 = scmp.eq.s32.totalorder %s39, 7
    %p242 = por %p240, %p241
    %p244 = scmp.ne.s32.totalorder %s227, %s243
    %p245 = scmp.eq.s32.totalorder %s39, 0
    %p246 = por %p244, %p245
    %s248 = sadd.s32 %s247, 1
    %p251 = scmp.eq.s32.totalorder %s33, 7
    %p252 = scmp.ne.s32.totalorder %s247, %s249
    %p253 = scmp.eq.s32.totalorder %s33, 0
    %p254 = por %p252, %p253
    %p255 = scmp.ne.s32.totalorder %s247, %s249
    %p256 = scmp.eq.s32.totalorder %s38, 7
    %p257 = por %p255, %p256
    %p258 = scmp.ne.s32.totalorder %s249, %s250
    %p259 = scmp.eq.s32.totalorder %s38, 0
    %p260 = por %p258, %p259
    %p261 = scmp.ne.s32.totalorder %s249, %s250
    %p262 = scmp.eq.s32.totalorder %s39, 7
    %p263 = por %p261, %p262
    %p265 = scmp.ne.s32.totalorder %s250, %s264
    %p266 = scmp.eq.s32.totalorder %s39, 0
    %p267 = por %p265, %p266
    %s269 = sadd.s32 %s268, 1
    %p272 = scmp.eq.s32.totalorder %s33, 7
    %p273 = scmp.ne.s32.totalorder %s268, %s270
    %p274 = scmp.eq.s32.totalorder %s33, 0
    %p275 = por %p273, %p274
    %p276 = scmp.ne.s32.totalorder %s268, %s270
    %p277 = scmp.eq.s32.totalorder %s38, 7
    %p278 = por %p276, %p277
    %p279 = scmp.ne.s32.totalorder %s270, %s271
    %p280 = scmp.eq.s32.totalorder %s38, 0
    %p281 = por %p279, %p280
    %p282 = scmp.ne.s32.totalorder %s270, %s271
    %p283 = scmp.eq.s32.totalorder %s39, 7
    %p284 = por %p282, %p283
    %p286 = scmp.ne.s32.totalorder %s271, %s285
    %p287 = scmp.eq.s32.totalorder %s39, 0
    %p288 = por %p286, %p287
    %s290 = sadd.s32 %s289, 1
    %p293 = scmp.eq.s32.totalorder %s33, 7
    %p294 = scmp.ne.s32.totalorder %s289, %s291
    %p295 = scmp.eq.s32.totalorder %s33, 0
    %p296 = por %p294, %p295
    %p297 = scmp.ne.s32.totalorder %s289, %s291
    %p298 = scmp.eq.s32.totalorder %s38, 7
    %p299 = por %p297, %p298
    %p300 = scmp.ne.s32.totalorder %s291, %s292
    %p301 = scmp.eq.s32.totalorder %s38, 0
    %p302 = por %p300, %p301
    %p303 = scmp.ne.s32.totalorder %s291, %s292
    %p304 = scmp.eq.s32.totalorder %s39, 7
    %p305 = por %p303, %p304
    %p307 = scmp.ne.s32.totalorder %s292, %s306
    %p308 = scmp.eq.s32.totalorder %s39, 0
    %p309 = por %p307, %p308
    %s311 = sadd.s32 %s310, 1
    %p314 = scmp.eq.s32.totalorder %s33, 7
    %p315 = scmp.ne.s32.totalorder %s310, %s312
    %p316 = scmp.eq.s32.totalorder %s33, 0
    %p317 = por %p315, %p316
    %p318 = scmp.ne.s32.totalorder %s310, %s312
    %p319 = scmp.eq.s32.totalorder %s38, 7
    %p320 = por %p318, %p319
    %p321 = scmp.ne.s32.totalorder %s312, %s313
    %p322 = scmp.eq.s32.totalorder %s38, 0
    %p323 = por %p321, %p322
    %p324 = scmp.ne.s32.totalorder %s312, %s313
    %p325 = scmp.eq.s32.totalorder %s39, 7
    %p326 = por %p324, %p325
    %p328 = scmp.ne.s32.totalorder %s313, %s327
    %p329 = scmp.eq.s32.totalorder %s39, 0
    %p330 = por %p328, %p329
    %s332 = sadd.s32 %s331, 1
    %p335 = scmp.eq.s32.totalorder %s33, 7
    %p336 = scmp.ne.s32.totalorder %s331, %s333
    %p337 = scmp.eq.s32.totalorder %s33, 0
    %p338 = por %p336, %p337
    %p339 = scmp.ne.s32.totalorder %s331, %s333
    %p340 = scmp.eq.s32.totalorder %s38, 7
    %p341 = por %p339, %p340
    %p342 = scmp.ne.s32.totalorder %s333, %s334
    %p343 = scmp.eq.s32.totalorder %s38, 0
    %p344 = por %p342, %p343
    %p345 = scmp.ne.s32.totalorder %s333, %s334
    %p346 = scmp.eq.s32.totalorder %s39, 7
    %p347 = por %p345, %p346
    %p349 = scmp.ne.s32.totalorder %s334, %s348
    %p350 = scmp.eq.s32.totalorder %s39, 0
    %p351 = por %p349, %p350
    %s353 = sadd.s32 %s352, 1
    %p356 = scmp.eq.s32.totalorder %s33, 7
    %p357 = scmp.ne.s32.totalorder %s352, %s354
    %p358 = scmp.eq.s32.totalorder %s33, 0
    %p359 = por %p357, %p358
    %p360 = scmp.ne.s32.totalorder %s352, %s354
    %p361 = scmp.eq.s32.totalorder %s38, 7
    %p362 = por %p360, %p361
    %p363 = scmp.ne.s32.totalorder %s354, %s355
    %p364 = scmp.eq.s32.totalorder %s38, 0
    %p365 = por %p363, %p364
    %p366 = scmp.ne.s32.totalorder %s354, %s355
    %p367 = scmp.eq.s32.totalorder %s39, 7
    %p368 = por %p366, %p367
    %p370 = scmp.ne.s32.totalorder %s355, %s369
    %p371 = scmp.eq.s32.totalorder %s39, 0
    %p372 = por %p370, %p371
    %s374 = sadd.s32 %s373, 1
    %p377 = scmp.eq.s32.totalorder %s33, 7
    %p378 = scmp.ne.s32.totalorder %s373, %s375
    %p379 = scmp.eq.s32.totalorder %s33, 0
    %p380 = por %p378, %p379
    %p381 = scmp.ne.s32.totalorder %s373, %s375
    %p382 = scmp.eq.s32.totalorder %s38, 7
    %p383 = por %p381, %p382
    %p384 = scmp.ne.s32.totalorder %s375, %s376
    %p385 = scmp.eq.s32.totalorder %s38, 0
    %p386 = por %p384, %p385
    %p387 = scmp.ne.s32.totalorder %s375, %s376
    %p388 = scmp.eq.s32.totalorder %s39, 7
    %p389 = por %p387, %p388
    %p391 = scmp.ne.s32.totalorder %s376, %s390
    %p392 = scmp.eq.s32.totalorder %s39, 0
    %p393 = por %p391, %p392
    %s395 = sadd.s32 %s394, 1
    %p398 = scmp.eq.s32.totalorder %s33, 7
    %p399 = scmp.ne.s32.totalorder %s394, %s396
    %p400 = scmp.eq.s32.totalorder %s33, 0
    %p401 = por %p399, %p400
    %p402 = scmp.ne.s32.totalorder %s394, %s396
    %p403 = scmp.eq.s32.totalorder %s38, 7
    %p404 = por %p402, %p403
    %p405 = scmp.ne.s32.totalorder %s396, %s397
    %p406 = scmp.eq.s32.totalorder %s38, 0
    %p407 = por %p405, %p406
    %p408 = scmp.ne.s32.totalorder %s396, %s397
    %p409 = scmp.eq.s32.totalorder %s39, 7
    %p410 = por %p408, %p409
    %p412 = scmp.ne.s32.totalorder %s397, %s411
    %p413 = scmp.eq.s32.totalorder %s39, 0
    %p414 = por %p412, %p413
    %s416 = sadd.s32 %s415, 1
    %p419 = scmp.eq.s32.totalorder %s33, 7
    %p420 = scmp.ne.s32.totalorder %s415, %s417
    %p421 = scmp.eq.s32.totalorder %s33, 0
    %p422 = por %p420, %p421
    %p423 = scmp.ne.s32.totalorder %s415, %s417
    %p424 = scmp.eq.s32.totalorder %s38, 7
    %p425 = por %p423, %p424
    %p426 = scmp.ne.s32.totalorder %s417, %s418
    %p427 = scmp.eq.s32.totalorder %s38, 0
    %p428 = por %p426, %p427
    %p429 = scmp.ne.s32.totalorder %s417, %s418
    %p430 = scmp.eq.s32.totalorder %s39, 7
    %p431 = por %p429, %p430
    %p433 = scmp.ne.s32.totalorder %s418, %s432
    %p434 = scmp.eq.s32.totalorder %s39, 0
    %p435 = por %p433, %p434
    %s437 = sadd.s32 %s436, 1
    %p440 = scmp.eq.s32.totalorder %s33, 7
    %p441 = scmp.ne.s32.totalorder %s436, %s438
    %p442 = scmp.eq.s32.totalorder %s33, 0
    %p443 = por %p441, %p442
    %p444 = scmp.ne.s32.totalorder %s436, %s438
    %p445 = scmp.eq.s32.totalorder %s38, 7
    %p446 = por %p444, %p445
    %p447 = scmp.ne.s32.totalorder %s438, %s439
    %p448 = scmp.eq.s32.totalorder %s38, 0
    %p449 = por %p447, %p448
    %p450 = scmp.ne.s32.totalorder %s438, %s439
    %p451 = scmp.eq.s32.totalorder %s39, 7
    %p452 = por %p450, %p451
    %p454 = scmp.ne.s32.totalorder %s439, %s453
    %p455 = scmp.eq.s32.totalorder %s39, 0
    %p456 = por %p454, %p455
    %s457 = ssub.s32 %s40, %s52
    %p458 = scmp.eq.s32.totalorder %s457, 0
    %s460 = sadd.s32 %s459, 1
    %s461 = scalar_select %p458, %s459, %s460
    %p464 = pneg %p458
    %p465 = scmp.eq.s32.totalorder %s33, 7
    %p466 = por %p464, %p465
    %p467 = scmp.ne.s32.totalorder %s459, %s462
    %p468 = scmp.eq.s32.totalorder %s33, 0
    %p469 = por %p467, %p468
    %p470 = scmp.ne.s32.totalorder %s459, %s462
    %p471 = scmp.eq.s32.totalorder %s38, 7
    %p472 = por %p470, %p471
    %p473 = scmp.ne.s32.totalorder %s462, %s463
    %p474 = scmp.eq.s32.totalorder %s38, 0
    %p475 = por %p473, %p474
    %p476 = scmp.ne.s32.totalorder %s462, %s463
    %p477 = scmp.eq.s32.totalorder %s39, 7
    %p478 = por %p476, %p477
    %p480 = scmp.ne.s32.totalorder %s463, %s479
    %p481 = scmp.eq.s32.totalorder %s39, 0
    %p482 = por %p480, %p481
    %p483 = scmp.le.s32.totalorder 1, %s33
    %p484 = scmp.lt.s32.totalorder %s33, 9
    %p485 = pnand %p483, %p484
    %p486 = pneg %p485
    // Predicated region
    $region9: #{tpu_custom_call.1} parent=5 // pred_check
      _
    $region10: #{tpu_custom_call.1} parent=5 // pred_check_branch
      %488 = sbr.rel (%p485) target = $region12
    $region11: #{tpu_custom_call.1} parent=5 // pred_region
      %s489 = ssub.s32 %s33, 1
      // Predicated region
      $region13: #{tpu_custom_call.1} parent=11 // pred_check
        %p490 = pneg %p260
      $region14: #{tpu_custom_call.1} parent=11 // pred_check_branch
        %492 = sbr.rel (%p490) target = $region16
      $region15: #{tpu_custom_call.1} parent=11 // pred_region
        _
      $region16: #{tpu_custom_call.1} parent=11 // pred_fallthru
        _
      // Predicated region
      $region17: #{tpu_custom_call.1} parent=11 // pred_check
        %p493 = pneg %p281
      $region18: #{tpu_custom_call.1} parent=11 // pred_check_branch
        %495 = sbr.rel (%p493) target = $region20
      $region19: #{tpu_custom_call.1} parent=11 // pred_region
        _
      $region20: #{tpu_custom_call.1} parent=11 // pred_fallthru
        _
      // Predicated region
      $region21: #{tpu_custom_call.1} parent=11 // pred_check
        %p496 = pneg %p302
      $region22: #{tpu_custom_call.1} parent=11 // pred_check_branch
        %498 = sbr.rel (%p496) target = $region24
      $region23: #{tpu_custom_call.1} parent=11 // pred_region
        _
      $region24: #{tpu_custom_call.1} parent=11 // pred_fallthru
        _
      // Predicated region
      $region25: #{tpu_custom_call.1} parent=11 // pred_check
        %p499 = pneg %p323
      $region26: #{tpu_custom_call.1} parent=11 // pred_check_branch
        %501 = sbr.rel (%p499) target = $region28
      $region27: #{tpu_custom_call.1} parent=11 // pred_region
        _
      $region28: #{tpu_custom_call.1} parent=11 // pred_fallthru
        _
      // Predicated region
      $region29: #{tpu_custom_call.1} parent=11 // pred_check
        %p502 = pneg %p344
      $region30: #{tpu_custom_call.1} parent=11 // pred_check_branch
        %504 = sbr.rel (%p502) target = $region32
      $region31: #{tpu_custom_call.1} parent=11 // pred_region
        _
      $region32: #{tpu_custom_call.1} parent=11 // pred_fallthru
        _
      // Predicated region
      $region33: #{tpu_custom_call.1} parent=11 // pred_check
        %p505 = pneg %p365
      $region34: #{tpu_custom_call.1} parent=11 // pred_check_branch
        %507 = sbr.rel (%p505) target = $region36
      $region35: #{tpu_custom_call.1} parent=11 // pred_region
        _
      $region36: #{tpu_custom_call.1} parent=11 // pred_fallthru
        _
      // Predicated region
      $region37: #{tpu_custom_call.1} parent=11 // pred_check
        %p508 = pneg %p386
      $region38: #{tpu_custom_call.1} parent=11 // pred_check_branch
        %510 = sbr.rel (%p508) target = $region40
      $region39: #{tpu_custom_call.1} parent=11 // pred_region
        _
      $region40: #{tpu_custom_call.1} parent=11 // pred_fallthru
        _
      // Predicated region
      $region41: #{tpu_custom_call.1} parent=11 // pred_check
        %p511 = pneg %p407
      $region42: #{tpu_custom_call.1} parent=11 // pred_check_branch
        %513 = sbr.rel (%p511) target = $region44
      $region43: #{tpu_custom_call.1} parent=11 // pred_region
        _
      $region44: #{tpu_custom_call.1} parent=11 // pred_fallthru
        _
      // Predicated region
      $region45: #{tpu_custom_call.1} parent=11 // pred_check
        %p514 = pneg %p428
      $region46: #{tpu_custom_call.1} parent=11 // pred_check_branch
        %516 = sbr.rel (%p514) target = $region48
      $region47: #{tpu_custom_call.1} parent=11 // pred_region
        _
      $region48: #{tpu_custom_call.1} parent=11 // pred_fallthru
        _
      // Predicated region
      $region49: #{tpu_custom_call.1} parent=11 // pred_check
        %p517 = pneg %p449
      $region50: #{tpu_custom_call.1} parent=11 // pred_check_branch
        %519 = sbr.rel (%p517) target = $region52
      $region51: #{tpu_custom_call.1} parent=11 // pred_region
        _
      $region52: #{tpu_custom_call.1} parent=11 // pred_fallthru
        _
    $region12: #{tpu_custom_call.1} parent=5 // pred_fallthru
      _
    %p520 = scmp.lt.s32.totalorder %s33, 8
    // Predicated region
    $region53: #{tpu_custom_call.1} parent=5 // pred_check
      %p521 = pneg %p520
    $region54: #{tpu_custom_call.1} parent=5 // pred_check_branch
      %523 = sbr.rel (%p521) target = $region56
    $region55: #{tpu_custom_call.1} parent=5 // pred_region
      // Predicated region
      $region57: #{tpu_custom_call.1} parent=55 // pred_check
        %p524 = pneg %p81
      $region58: #{tpu_custom_call.1} parent=55 // pred_check_branch
        %526 = sbr.rel (%p524) target = $region60
      $region59: #{tpu_custom_call.1} parent=55 // pred_region
        %s527 = sld [smem:[#allocation4 + %s40]]
        %s528 = sld [smem:[#allocation5 + %s40]]
        %s529 = ssub.s32 %s528, 1
        %p530 = scmp.gt.s32.totalorder %s529, 0
        %s531 = scalar_select %p530, %s529, 0
        %p532 = scmp.lt.s32.totalorder %s41, %s531
        %s533 = scalar_select %p532, %s41, %s531
        %s534 = sadd.s32 %s527, %s533
        %p535 = scmp.lt.s32.totalorder %s534, 2
        %s536 = scalar_select %p535, %s534, 2
        %s537 = scalar_lea.vmem %s2, %s536
        %s538 = sld [smem:[#allocation4 + %s40]]
        %s539 = sld [smem:[#allocation5 + %s40]]
        %s540 = ssub.s32 %s539, 1
        %p541 = scmp.gt.s32.totalorder %s540, 0
        %s542 = scalar_select %p541, %s540, 0
        %p543 = scmp.lt.s32.totalorder %s41, %s542
        %s544 = scalar_select %p543, %s41, %s542
        %s545 = sadd.s32 %s538, %s544
      $region60: #{tpu_custom_call.1} parent=55 // pred_fallthru
        _
      // Predicated region
      $region61: #{tpu_custom_call.1} parent=55 // pred_check
        %p546 = pneg %p123
      $region62: #{tpu_custom_call.1} parent=55 // pred_check_branch
        %548 = sbr.rel (%p546) target = $region64
      $region63: #{tpu_custom_call.1} parent=55 // pred_region
        %s549 = sld [smem:[#allocation4 + %s40]]
        %s550 = sld [smem:[#allocation5 + %s40]]
        %s551 = ssub.s32 %s550, 1
        %p552 = scmp.gt.s32.totalorder %s551, 0
        %s553 = scalar_select %p552, %s551, 0
        %p554 = scmp.lt.s32.totalorder %s41, %s553
        %s555 = scalar_select %p554, %s41, %s553
        %s556 = sadd.s32 %s549, %s555
        %s557 = smul.u32 16, %s556
        %p558 = scmp.lt.s32.totalorder %s557, 47
        %s559 = scalar_select %p558, %s557, 47
        %s560 = smul.addr %s559, 8
        %s561 = scalar_lea.vmem %s3, %s560
        %s562 = sld [smem:[#allocation4 + %s40]]
        %s563 = sld [smem:[#allocation5 + %s40]]
        %s564 = ssub.s32 %s563, 1
        %p565 = scmp.gt.s32.totalorder %s564, 0
        %s566 = scalar_select %p565, %s564, 0
        %p567 = scmp.lt.s32.totalorder %s41, %s566
        %s568 = scalar_select %p567, %s41, %s566
        %s569 = sadd.s32 %s562, %s568
        %s570 = smul.u32 16, %s569
      $region64: #{tpu_custom_call.1} parent=55 // pred_fallthru
        _
      // Predicated region
      $region65: #{tpu_custom_call.1} parent=55 // pred_check
        %p571 = pneg %p165
      $region66: #{tpu_custom_call.1} parent=55 // pred_check_branch
        %573 = sbr.rel (%p571) target = $region68
      $region67: #{tpu_custom_call.1} parent=55 // pred_region
        %s574 = sld [smem:[#allocation4 + %s40]]
        %s575 = sld [smem:[#allocation5 + %s40]]
        %s576 = ssub.s32 %s575, 1
        %p577 = scmp.gt.s32.totalorder %s576, 0
        %s578 = scalar_select %p577, %s576, 0
        %p579 = scmp.lt.s32.totalorder %s41, %s578
        %s580 = scalar_select %p579, %s41, %s578
        %s581 = sadd.s32 %s574, %s580
        %s582 = smul.u32 16, %s581
        %p583 = scmp.lt.s32.totalorder %s582, 47
        %s584 = scalar_select %p583, %s582, 47
        %s585 = smul.addr %s584, 8
        %s586 = scalar_lea.vmem %s4, %s585
        %s587 = sld [smem:[#allocation4 + %s40]]
        %s588 = sld [smem:[#allocation5 + %s40]]
        %s589 = ssub.s32 %s588, 1
        %p590 = scmp.gt.s32.totalorder %s589, 0
        %s591 = scalar_select %p590, %s589, 0
        %p592 = scmp.lt.s32.totalorder %s41, %s591
        %s593 = scalar_select %p592, %s41, %s591
        %s594 = sadd.s32 %s587, %s593
        %s595 = smul.u32 16, %s594
      $region68: #{tpu_custom_call.1} parent=55 // pred_fallthru
        _
      // Predicated region
      $region69: #{tpu_custom_call.1} parent=55 // pred_check
        %p596 = pneg %p207
      $region70: #{tpu_custom_call.1} parent=55 // pred_check_branch
        %598 = sbr.rel (%p596) target = $region72
      $region71: #{tpu_custom_call.1} parent=55 // pred_region
        %s599 = sld [smem:[#allocation4 + %s40]]
        %s600 = sld [smem:[#allocation5 + %s40]]
        %s601 = ssub.s32 %s600, 1
        %p602 = scmp.gt.s32.totalorder %s601, 0
        %s603 = scalar_select %p602, %s601, 0
        %p604 = scmp.lt.s32.totalorder %s41, %s603
        %s605 = scalar_select %p604, %s41, %s603
        %s606 = sadd.s32 %s599, %s605
        %s607 = smul.u32 16, %s606
        %p608 = scmp.lt.s32.totalorder %s607, 47
        %s609 = scalar_select %p608, %s607, 47
        %s610 = smul.addr %s609, 8
        %s611 = scalar_lea.vmem %s5, %s610
        %s612 = sld [smem:[#allocation4 + %s40]]
        %s613 = sld [smem:[#allocation5 + %s40]]
        %s614 = ssub.s32 %s613, 1
        %p615 = scmp.gt.s32.totalorder %s614, 0
        %s616 = scalar_select %p615, %s614, 0
        %p617 = scmp.lt.s32.totalorder %s41, %s616
        %s618 = scalar_select %p617, %s41, %s616
        %s619 = sadd.s32 %s612, %s618
        %s620 = smul.u32 16, %s619
      $region72: #{tpu_custom_call.1} parent=55 // pred_fallthru
        _
      // Predicated region
      $region73: #{tpu_custom_call.1} parent=55 // pred_check
        %p621 = pneg %p233
      $region74: #{tpu_custom_call.1} parent=55 // pred_check_branch
        %623 = sbr.rel (%p621) target = $region76
      $region75: #{tpu_custom_call.1} parent=55 // pred_region
        %p624 = scmp.lt.s32.totalorder %s40, 3
        %s625 = scalar_select %p624, %s40, 3
        %s626 = smul.addr %s625, 8
        %s627 = scalar_lea.vmem %s6, %s626
      $region76: #{tpu_custom_call.1} parent=55 // pred_fallthru
        _
    $region56: #{tpu_custom_call.1} parent=5 // pred_fallthru
      _
    %p628 = scmp.le.s32.totalorder 1, %s33
    %p629 = scmp.lt.s32.totalorder %s33, 9
    %p630 = pnand %p628, %p629
    %p631 = pneg %p630
    // Predicated region
    $region77: #{tpu_custom_call.1} parent=5 // pred_check
      _
    $region78: #{tpu_custom_call.1} parent=5 // pred_check_branch
      %633 = sbr.rel (%p630) target = $region80
    $region79: #{tpu_custom_call.1} parent=5 // pred_region
      %s634 = ssub.s32 %s33, 1
      %s635 = sld [smem:[#allocation4 + %s42]]
      %s636 = sld [smem:[#allocation5 + %s42]]
      %s637 = ssub.s32 %s636, 1
      %p638 = scmp.gt.s32.totalorder %s637, 0
      %s639 = scalar_select %p638, %s637, 0
      %p640 = scmp.lt.s32.totalorder %s43, %s639
      %s641 = scalar_select %p640, %s43, %s639
      %s642 = sadd.s32 %s635, %s641
      %p643 = scmp.lt.s32.totalorder %s642, 2
      %s644 = scalar_select %p643, %s642, 2
      %s645 = scalar_lea.vmem %s2, %s644
      %p646 = pneg %p87
      %p647 = pneg %p84
      %s648 = sld [smem:[#allocation4 + %s42]]
      %s649 = sld [smem:[#allocation5 + %s42]]
      %s650 = ssub.s32 %s649, 1
      %p651 = scmp.gt.s32.totalorder %s650, 0
      %s652 = scalar_select %p651, %s650, 0
      %p653 = scmp.lt.s32.totalorder %s43, %s652
      %s654 = scalar_select %p653, %s43, %s652
      %s655 = sadd.s32 %s648, %s654
      %s656 = smul.u32 16, %s655
      %p657 = scmp.lt.s32.totalorder %s656, 47
      %s658 = scalar_select %p657, %s656, 47
      %s659 = smul.addr %s658, 8
      %s660 = scalar_lea.vmem %s3, %s659
      %p661 = pneg %p129
      %p662 = pneg %p126
      %s663 = sld [smem:[#allocation4 + %s42]]
      %s664 = sld [smem:[#allocation5 + %s42]]
      %s665 = ssub.s32 %s664, 1
      %p666 = scmp.gt.s32.totalorder %s665, 0
      %s667 = scalar_select %p666, %s665, 0
      %p668 = scmp.lt.s32.totalorder %s43, %s667
      %s669 = scalar_select %p668, %s43, %s667
      %s670 = sadd.s32 %s663, %s669
      %s671 = smul.u32 16, %s670
      %p672 = scmp.lt.s32.totalorder %s671, 47
      %s673 = scalar_select %p672, %s671, 47
      %s674 = smul.addr %s673, 8
      %s675 = scalar_lea.vmem %s4, %s674
      %p676 = pneg %p171
      %p677 = pneg %p168
      %s678 = sld [smem:[#allocation4 + %s42]]
      %s679 = sld [smem:[#allocation5 + %s42]]
      %s680 = ssub.s32 %s679, 1
      %p681 = scmp.gt.s32.totalorder %s680, 0
      %s682 = scalar_select %p681, %s680, 0
      %p683 = scmp.lt.s32.totalorder %s43, %s682
      %s684 = scalar_select %p683, %s43, %s682
      %s685 = sadd.s32 %s678, %s684
      %s686 = smul.u32 16, %s685
      %p687 = scmp.lt.s32.totalorder %s686, 47
      %s688 = scalar_select %p687, %s686, 47
      %s689 = smul.addr %s688, 8
      %s690 = scalar_lea.vmem %s5, %s689
      %p691 = pneg %p213
      %p692 = pneg %p210
      %p693 = scmp.lt.s32.totalorder %s42, 3
      %s694 = scalar_select %p693, %s42, 3
      %s695 = smul.addr %s694, 8
      %s696 = scalar_lea.vmem %s6, %s695
      %p697 = pneg %p239
      %p698 = pneg %p236
      %p699 = pneg %p260
      %p700 = pneg %p257
      %p701 = pneg %p281
      %p702 = pneg %p278
      %p703 = pneg %p302
      %p704 = pneg %p299
      %p705 = pneg %p323
      %p706 = pneg %p320
      %p707 = pneg %p344
      %p708 = pneg %p341
      %p709 = pneg %p365
      %p710 = pneg %p362
      %p711 = pneg %p386
      %p712 = pneg %p383
      %p713 = pneg %p407
      %p714 = pneg %p404
      %p715 = pneg %p428
      %p716 = pneg %p425
      %p717 = pneg %p449
      %p718 = pneg %p446
      %p719 = pneg %p475
      %p720 = pneg %p472
      %p721 = scmp.lt.s32.totalorder %s42, 3
      %s722 = scalar_select %p721, %s42, 3
      %s723 = smul.addr %s722, 8
      %s724 = scalar_lea.vmem %s17, %s723
      %s725 = sld [smem:[#allocation4 + %s42]]
      %s726 = sld [smem:[#allocation5 + %s42]]
      %s727 = ssub.s32 %s726, 1
      %p728 = scmp.gt.s32.totalorder %s727, 0
      %s729 = scalar_select %p728, %s727, 0
      %p730 = scmp.lt.s32.totalorder %s43, %s729
      %s731 = scalar_select %p730, %s43, %s729
      %s732 = sadd.s32 %s725, %s731
      %p733 = scmp.lt.s32.totalorder %s732, 2
      %s734 = scalar_select %p733, %s732, 2
      %s735 = scalar_lea.vmem %s2, %s734
      %s736 = sld [smem:[#allocation4 + %s42]]
      %s737 = sld [smem:[#allocation5 + %s42]]
      %s738 = ssub.s32 %s737, 1
      %p739 = scmp.gt.s32.totalorder %s738, 0
      %s740 = scalar_select %p739, %s738, 0
      %p741 = scmp.lt.s32.totalorder %s43, %s740
      %s742 = scalar_select %p741, %s43, %s740
      %s743 = sadd.s32 %s736, %s742
      %s744 = sld [smem:[#allocation4 + %s42]]
      %s745 = sld [smem:[#allocation5 + %s42]]
      %s746 = ssub.s32 %s745, 1
      %p747 = scmp.gt.s32.totalorder %s746, 0
      %s748 = scalar_select %p747, %s746, 0
      %p749 = scmp.lt.s32.totalorder %s43, %s748
      %s750 = scalar_select %p749, %s43, %s748
      %s751 = sadd.s32 %s744, %s750
      %s752 = smul.u32 16, %s751
      %p753 = scmp.lt.s32.totalorder %s752, 47
      %s754 = scalar_select %p753, %s752, 47
      %s755 = smul.addr %s754, 8
      %s756 = scalar_lea.vmem %s3, %s755
      %s757 = sld [smem:[#allocation4 + %s42]]
      %s758 = sld [smem:[#allocation5 + %s42]]
      %s759 = ssub.s32 %s758, 1
      %p760 = scmp.gt.s32.totalorder %s759, 0
      %s761 = scalar_select %p760, %s759, 0
      %p762 = scmp.lt.s32.totalorder %s43, %s761
      %s763 = scalar_select %p762, %s43, %s761
      %s764 = sadd.s32 %s757, %s763
      %s765 = smul.u32 16, %s764
      %s766 = sld [smem:[#allocation4 + %s42]]
      %s767 = sld [smem:[#allocation5 + %s42]]
      %s768 = ssub.s32 %s767, 1
      %p769 = scmp.gt.s32.totalorder %s768, 0
      %s770 = scalar_select %p769, %s768, 0
      %p771 = scmp.lt.s32.totalorder %s43, %s770
      %s772 = scalar_select %p771, %s43, %s770
      %s773 = sadd.s32 %s766, %s772
      %s774 = smul.u32 16, %s773
      %p775 = scmp.lt.s32.totalorder %s774, 47
      %s776 = scalar_select %p775, %s774, 47
      %s777 = smul.addr %s776, 8
      %s778 = scalar_lea.vmem %s4, %s777
      %s779 = sld [smem:[#allocation4 + %s42]]
      %s780 = sld [smem:[#allocation5 + %s42]]
      %s781 = ssub.s32 %s780, 1
      %p782 = scmp.gt.s32.totalorder %s781, 0
      %s783 = scalar_select %p782, %s781, 0
      %p784 = scmp.lt.s32.totalorder %s43, %s783
      %s785 = scalar_select %p784, %s43, %s783
      %s786 = sadd.s32 %s779, %s785
      %s787 = smul.u32 16, %s786
      %s788 = sld [smem:[#allocation4 + %s42]]
      %s789 = sld [smem:[#allocation5 + %s42]]
      %s790 = ssub.s32 %s789, 1
      %p791 = scmp.gt.s32.totalorder %s790, 0
      %s792 = scalar_select %p791, %s790, 0
      %p793 = scmp.lt.s32.totalorder %s43, %s792
      %s794 = scalar_select %p793, %s43, %s792
      %s795 = sadd.s32 %s788, %s794
      %s796 = smul.u32 16, %s795
      %p797 = scmp.lt.s32.totalorder %s796, 47
      %s798 = scalar_select %p797, %s796, 47
      %s799 = smul.addr %s798, 8
      %s800 = scalar_lea.vmem %s5, %s799
      %s801 = sld [smem:[#allocation4 + %s42]]
      %s802 = sld [smem:[#allocation5 + %s42]]
      %s803 = ssub.s32 %s802, 1
      %p804 = scmp.gt.s32.totalorder %s803, 0
      %s805 = scalar_select %p804, %s803, 0
      %p806 = scmp.lt.s32.totalorder %s43, %s805
      %s807 = scalar_select %p806, %s43, %s805
      %s808 = sadd.s32 %s801, %s807
      %s809 = smul.u32 16, %s808
      %p810 = scmp.lt.s32.totalorder %s42, 3
      %s811 = scalar_select %p810, %s42, 3
      %s812 = smul.addr %s811, 8
      %s813 = scalar_lea.vmem %s6, %s812
      %p814 = scmp.lt.s32.totalorder %s42, 3
      %s815 = scalar_select %p814, %s42, 3
      %s816 = smul.addr %s815, 8
      %s817 = scalar_lea.vmem %s17, %s816
      %p819 = scmp.eq.s32.totalorder %s43, 0
      // Predicated region
      $region81: #{tpu_custom_call.1} parent=79 // pred_check
        %p820 = pneg %p819
      $region82: #{tpu_custom_call.1} parent=79 // pred_check_branch
        %822 = sbr.rel (%p820) target = $region84
      $region83: #{tpu_custom_call.1} parent=79 // pred_region
        %823 = vst [vmem:[#allocation2] sm:$0xff] 0.0
        %vm824 = vcmask 130048
        %825 = vst.msk [vmem:[#allocation2 + $0x8] sm:$0xff] %vm824, 0.0
      $region84: #{tpu_custom_call.1} parent=79 // pred_fallthru
        _
      %s826 = sld [smem:[#allocation5 + %s42]]
      %p827 = scmp.lt.s32.totalorder %s43, %s826
      // Predicated region
      $region85: #{tpu_custom_call.1} parent=79 // pred_check
        %p828 = pneg %p827
      $region86: #{tpu_custom_call.1} parent=79 // pred_check_branch
        %830 = sbr.rel (%p828) target = $region88
      $region87: #{tpu_custom_call.1} parent=79 // pred_region
        %v831 = vld [vmem:[%s756] sm:$0xff]
        %v832 = vld [vmem:[%s756 + $0x8] sm:$0xff]
        %v833 = vld [vmem:[%s756 + $0x10] sm:$0xff]
        %v834 = vld [vmem:[%s756 + $0x18] sm:$0xff]
        %v835 = vld [vmem:[%s756 + $0x20] sm:$0xff]
        %v836 = vld [vmem:[%s756 + $0x28] sm:$0xff]
        %v837 = vld [vmem:[%s756 + $0x30] sm:$0xff]
        %v838 = vld [vmem:[%s756 + $0x38] sm:$0xff]
        %v839 = vld [vmem:[%s756 + $0x40] sm:$0xff]
        %v840 = vld [vmem:[%s756 + $0x48] sm:$0xff]
        %v841 = vld [vmem:[%s756 + $0x50] sm:$0xff]
        %v842 = vld [vmem:[%s756 + $0x58] sm:$0xff]
        %v843 = vld [vmem:[%s756 + $0x60] sm:$0xff]
        %v844 = vld [vmem:[%s756 + $0x68] sm:$0xff]
        %v845 = vld [vmem:[%s756 + $0x70] sm:$0xff]
        %v846 = vld [vmem:[%s756 + $0x78] sm:$0xff]
        %v847 = vrcp.pop %v831
        %v848 = vmul.f32 1.0, %v847
        %v849 = vrcp.pop %v832
        %v850 = vmul.f32 1.0, %v849
        %v851 = vrcp.pop %v833
        %v852 = vmul.f32 1.0, %v851
        %v853 = vrcp.pop %v834
        %v854 = vmul.f32 1.0, %v853
        %v855 = vrcp.pop %v835
        %v856 = vmul.f32 1.0, %v855
        %v857 = vrcp.pop %v836
        %v858 = vmul.f32 1.0, %v857
        %v859 = vrcp.pop %v837
        %v860 = vmul.f32 1.0, %v859
        %v861 = vrcp.pop %v838
        %v862 = vmul.f32 1.0, %v861
        %v863 = vrcp.pop %v839
        %v864 = vmul.f32 1.0, %v863
        %v865 = vrcp.pop %v840
        %v866 = vmul.f32 1.0, %v865
        %v867 = vrcp.pop %v841
        %v868 = vmul.f32 1.0, %v867
        %v869 = vrcp.pop %v842
        %v870 = vmul.f32 1.0, %v869
        %v871 = vrcp.pop %v843
        %v872 = vmul.f32 1.0, %v871
        %v873 = vrcp.pop %v844
        %v874 = vmul.f32 1.0, %v873
        %v875 = vrcp.pop %v845
        %v876 = vmul.f32 1.0, %v875
        %v877 = vrcp.pop %v846
        %v878 = vmul.f32 1.0, %v877
        %v879 = vld [vmem:[%s12] sm:$0x1]
        %881 = vset.pattern.permute.xlu0 0
        %882 = vperm.xlu0 %881, %v848
        %v883 = vpop.permute.xlu0 %882
        %886 = vset.pattern.permute.xlu0 0
        %887 = vperm.xlu0 %886, %v850
        %v888 = vpop.permute.xlu0 %887
        %891 = vset.pattern.permute.xlu0 0
        %892 = vperm.xlu0 %891, %v852
        %v893 = vpop.permute.xlu0 %892
        %896 = vset.pattern.permute.xlu0 0
        %897 = vperm.xlu0 %896, %v854
        %v898 = vpop.permute.xlu0 %897
        %901 = vset.pattern.permute.xlu0 0
        %902 = vperm.xlu0 %901, %v856
        %v903 = vpop.permute.xlu0 %902
        %906 = vset.pattern.permute.xlu0 0
        %907 = vperm.xlu0 %906, %v858
        %v908 = vpop.permute.xlu0 %907
        %911 = vset.pattern.permute.xlu0 0
        %912 = vperm.xlu0 %911, %v860
        %v913 = vpop.permute.xlu0 %912
        %916 = vset.pattern.permute.xlu0 0
        %917 = vperm.xlu0 %916, %v862
        %v918 = vpop.permute.xlu0 %917
        %921 = vset.pattern.permute.xlu0 0
        %922 = vperm.xlu0 %921, %v864
        %v923 = vpop.permute.xlu0 %922
        %926 = vset.pattern.permute.xlu0 0
        %927 = vperm.xlu0 %926, %v866
        %v928 = vpop.permute.xlu0 %927
        %931 = vset.pattern.permute.xlu0 0
        %932 = vperm.xlu0 %931, %v868
        %v933 = vpop.permute.xlu0 %932
        %936 = vset.pattern.permute.xlu0 0
        %937 = vperm.xlu0 %936, %v870
        %v938 = vpop.permute.xlu0 %937
        %941 = vset.pattern.permute.xlu0 0
        %942 = vperm.xlu0 %941, %v872
        %v943 = vpop.permute.xlu0 %942
        %946 = vset.pattern.permute.xlu0 0
        %947 = vperm.xlu0 %946, %v874
        %v948 = vpop.permute.xlu0 %947
        %951 = vset.pattern.permute.xlu0 0
        %952 = vperm.xlu0 %951, %v876
        %v953 = vpop.permute.xlu0 %952
        %956 = vset.pattern.permute.xlu0 0
        %957 = vperm.xlu0 %956, %v878
        %v958 = vpop.permute.xlu0 %957
        %v961 = vlaneseq
        %v962 = vshrl.u32 %v961, 7
        %v963 = vsub.s32 0, %v962
        %v964 = vrot.slane %v879, %v963
        %v966 = vsub.f32 %v883, %v964
        %v967 = vsub.f32 %v888, %v964
        %v968 = vsub.f32 %v893, %v964
        %v969 = vsub.f32 %v898, %v964
        %v970 = vsub.f32 %v903, %v964
        %v971 = vsub.f32 %v908, %v964
        %v972 = vsub.f32 %v913, %v964
        %v973 = vsub.f32 %v918, %v964
        %v974 = vsub.f32 %v923, %v964
        %v975 = vsub.f32 %v928, %v964
        %v976 = vsub.f32 %v933, %v964
        %v977 = vsub.f32 %v938, %v964
        %v978 = vsub.f32 %v943, %v964
        %v979 = vsub.f32 %v948, %v964
        %v980 = vsub.f32 %v953, %v964
        %v981 = vsub.f32 %v958, %v964
        %v982 = vmul.f32 %v966, %v966
        %v983 = vmul.f32 %v967, %v967
        %v984 = vmul.f32 %v968, %v968
        %v985 = vmul.f32 %v969, %v969
        %v986 = vmul.f32 %v970, %v970
        %v987 = vmul.f32 %v971, %v971
        %v988 = vmul.f32 %v972, %v972
        %v989 = vmul.f32 %v973, %v973
        %v990 = vmul.f32 %v974, %v974
        %v991 = vmul.f32 %v975, %v975
        %v992 = vmul.f32 %v976, %v976
        %v993 = vmul.f32 %v977, %v977
        %v994 = vmul.f32 %v978, %v978
        %v995 = vmul.f32 %v979, %v979
        %v996 = vmul.f32 %v980, %v980
        %v997 = vmul.f32 %v981, %v981
        %v998 = vmul.f32 %v982, -33.56075
        %v999 = vmul.f32 %v983, -33.56075
        %v1000 = vmul.f32 %v984, -33.56075
        %v1001 = vmul.f32 %v985, -33.56075
        %v1002 = vmul.f32 %v986, -33.56075
        %v1003 = vmul.f32 %v987, -33.56075
        %v1004 = vmul.f32 %v988, -33.56075
        %v1005 = vmul.f32 %v989, -33.56075
        %v1006 = vmul.f32 %v990, -33.56075
        %v1007 = vmul.f32 %v991, -33.56075
        %v1008 = vmul.f32 %v992, -33.56075
        %v1009 = vmul.f32 %v993, -33.56075
        %v1010 = vmul.f32 %v994, -33.56075
        %v1011 = vmul.f32 %v995, -33.56075
        %v1012 = vmul.f32 %v996, -33.56075
        %v1013 = vmul.f32 %v997, -33.56075
        %v1014 = vmul.f32 %v998, 1.442695
        %v1015 = vpow.pop %v1014
        %v1016 = vmul.f32 %v999, 1.442695
        %v1017 = vpow.pop %v1016
        %v1018 = vmul.f32 %v1000, 1.442695
        %v1019 = vpow.pop %v1018
        %v1020 = vmul.f32 %v1001, 1.442695
        %v1021 = vpow.pop %v1020
        %v1022 = vmul.f32 %v1002, 1.442695
        %v1023 = vpow.pop %v1022
        %v1024 = vmul.f32 %v1003, 1.442695
        %v1025 = vpow.pop %v1024
        %v1026 = vmul.f32 %v1004, 1.442695
        %v1027 = vpow.pop %v1026
        %v1028 = vmul.f32 %v1005, 1.442695
        %v1029 = vpow.pop %v1028
        %v1030 = vmul.f32 %v1006, 1.442695
        %v1031 = vpow.pop %v1030
        %v1032 = vmul.f32 %v1007, 1.442695
        %v1033 = vpow.pop %v1032
        %v1034 = vmul.f32 %v1008, 1.442695
        %v1035 = vpow.pop %v1034
        %v1036 = vmul.f32 %v1009, 1.442695
        %v1037 = vpow.pop %v1036
        %v1038 = vmul.f32 %v1010, 1.442695
        %v1039 = vpow.pop %v1038
        %v1040 = vmul.f32 %v1011, 1.442695
        %v1041 = vpow.pop %v1040
        %v1042 = vmul.f32 %v1012, 1.442695
        %v1043 = vpow.pop %v1042
        %v1044 = vmul.f32 %v1013, 1.442695
        %v1045 = vpow.pop %v1044
        %v1046 = vld [vmem:[%s800] sm:$0xff]
        %v1047 = vld [vmem:[%s800 + $0x8] sm:$0xff]
        %v1048 = vld [vmem:[%s800 + $0x10] sm:$0xff]
        %v1049 = vld [vmem:[%s800 + $0x18] sm:$0xff]
        %v1050 = vld [vmem:[%s800 + $0x20] sm:$0xff]
        %v1051 = vld [vmem:[%s800 + $0x28] sm:$0xff]
        %v1052 = vld [vmem:[%s800 + $0x30] sm:$0xff]
        %v1053 = vld [vmem:[%s800 + $0x38] sm:$0xff]
        %v1054 = vld [vmem:[%s800 + $0x40] sm:$0xff]
        %v1055 = vld [vmem:[%s800 + $0x48] sm:$0xff]
        %v1056 = vld [vmem:[%s800 + $0x50] sm:$0xff]
        %v1057 = vld [vmem:[%s800 + $0x58] sm:$0xff]
        %v1058 = vld [vmem:[%s800 + $0x60] sm:$0xff]
        %v1059 = vld [vmem:[%s800 + $0x68] sm:$0xff]
        %v1060 = vld [vmem:[%s800 + $0x70] sm:$0xff]
        %v1061 = vld [vmem:[%s800 + $0x78] sm:$0xff]
        %v1062 = vld [vmem:[%s13] sm:$0xff]
        %vm1063 = vcmask 64512
        %v1065 = vsel %vm1063, %v1015, 0
        %v1068 = vsel %vm1063, %v1017, 0
        %v1071 = vsel %vm1063, %v1019, 0
        %v1074 = vsel %vm1063, %v1021, 0
        %v1077 = vsel %vm1063, %v1023, 0
        %v1080 = vsel %vm1063, %v1025, 0
        %v1083 = vsel %vm1063, %v1027, 0
        %v1086 = vsel %vm1063, %v1029, 0
        %v1089 = vsel %vm1063, %v1031, 0
        %v1092 = vsel %vm1063, %v1033, 0
        %v1095 = vsel %vm1063, %v1035, 0
        %v1098 = vsel %vm1063, %v1037, 0
        %v1101 = vsel %vm1063, %v1039, 0
        %v1104 = vsel %vm1063, %v1041, 0
        %v1107 = vsel %vm1063, %v1043, 0
        %v1110 = vsel %vm1063, %v1045, 0
        %1112 = vmatprep.subr.mxu0 0.0
        %1113 = vmatpush1.msra.mxu0 0.0
        %1114 = vmatprep.subr.mxu0 0.0
        %1115 = vmatpush1.msra.mxu0 0.0
        %1116 = vmatprep.subr.mxu0 0.0
        %1117 = vmatpush1.msra.mxu0 0.0
        %1118 = vmatprep.subr.mxu0 0.0
        %1119 = vmatpush1.msra.mxu0 0.0
        %1120 = vmatprep.subr.mxu0 0.0
        %1121 = vmatpush1.msra.mxu0 0.0
        %1122 = vmatprep.subr.mxu0 0.0
        %1123 = vmatpush1.msra.mxu0 0.0
        %1124 = vmatprep.subr.mxu0 0.0
        %1125 = vmatpush1.msra.mxu0 0.0
        %1126 = vmatprep.subr.mxu0 0.0
        %1127 = vmatpush1.msra.mxu0 0.0
        %1128 = vmatprep.subr.mxu0 0.0
        %1129 = vmatpush1.msra.mxu0 0.0
        %1130 = vmatprep.subr.mxu0 0.0
        %1131 = vmatpush1.msra.mxu0 0.0
        %1132 = vmatprep.subr.mxu0 0.0
        %1133 = vmatpush1.msra.mxu0 0.0
        %1134 = vmatprep.subr.mxu0 0.0
        %1135 = vmatpush1.msra.mxu0 0.0
        %1136 = vmatprep.subr.mxu0 0.0
        %1137 = vmatpush1.msra.mxu0 0.0
        %1138 = vmatprep.subr.mxu0 0.0
        %1139 = vmatpush1.msra.mxu0 0.0
        %1140 = vmatprep.subr.mxu0 0.0
        %1141 = vmatpush1.msra.mxu0 0.0
        %1142 = vmatprep.subr.mxu0 0.0
        %1143 = vmatpush1.msra.mxu0 %v1062
        %1144 = vmatprep.subr.mxu0 0.0
        %1145 = vmatpush2.msra.mxu0 0.0
        %1146 = vmatprep.subr.mxu0 0.0
        %1147 = vmatpush2.msra.mxu0 0.0
        %1148 = vmatprep.subr.mxu0 0.0
        %1149 = vmatpush2.msra.mxu0 0.0
        %1150 = vmatprep.subr.mxu0 0.0
        %1151 = vmatpush2.msra.mxu0 0.0
        %1152 = vmatprep.subr.mxu0 0.0
        %1153 = vmatpush2.msra.mxu0 0.0
        %1154 = vmatprep.subr.mxu0 0.0
        %1155 = vmatpush2.msra.mxu0 0.0
        %1156 = vmatprep.subr.mxu0 0.0
        %1157 = vmatpush2.msra.mxu0 0.0
        %1158 = vmatprep.subr.mxu0 0.0
        %1159 = vmatpush2.msra.mxu0 0.0
        %1160 = vmatprep.subr.mxu0 0.0
        %1161 = vmatpush2.msra.mxu0 0.0
        %1162 = vmatprep.subr.mxu0 0.0
        %1163 = vmatpush2.msra.mxu0 0.0
        %1164 = vmatprep.subr.mxu0 0.0
        %1165 = vmatpush2.msra.mxu0 0.0
        %1166 = vmatprep.subr.mxu0 0.0
        %1167 = vmatpush2.msra.mxu0 0.0
        %1168 = vmatprep.subr.mxu0 0.0
        %1169 = vmatpush2.msra.mxu0 0.0
        %1170 = vmatprep.subr.mxu0 0.0
        %1171 = vmatpush2.msra.mxu0 0.0
        %1172 = vmatprep.subr.mxu0 0.0
        %1173 = vmatpush2.msra.mxu0 0.0
        %1174 = vmatprep.subr.mxu0 0.0
        %1175 = vmatpush2.msra.mxu0 0.0
        %1176 = vmatprep.mubr.f32.mxu0 0.0
        %1177 = vmatmul.mubr.f32.gmra.mxu0 %v1065
        %v1178 = vpop.f32.mrf.mxu0
        %v1179 = vadd.f32 0.0, %v1178
        %v1180 = vpop.f32.mrf.mxu0
        %1181 = vmatprep.mubr.f32.mxu0 0.0
        %1182 = vmatmul.mubr.f32.gmra.mxu0 %v1068
        %v1183 = vpop.f32.mrf.mxu0
        %v1184 = vadd.f32 0.0, %v1183
        %v1185 = vpop.f32.mrf.mxu0
        %1186 = vmatprep.mubr.f32.mxu0 0.0
        %1187 = vmatmul.mubr.f32.gmra.mxu0 %v1071
        %v1188 = vpop.f32.mrf.mxu0
        %v1189 = vadd.f32 0.0, %v1188
        %v1190 = vpop.f32.mrf.mxu0
        %1191 = vmatprep.mubr.f32.mxu0 0.0
        %1192 = vmatmul.mubr.f32.gmra.mxu0 %v1074
        %v1193 = vpop.f32.mrf.mxu0
        %v1194 = vadd.f32 0.0, %v1193
        %v1195 = vpop.f32.mrf.mxu0
        %1196 = vmatprep.mubr.f32.mxu0 0.0
        %1197 = vmatmul.mubr.f32.gmra.mxu0 %v1077
        %v1198 = vpop.f32.mrf.mxu0
        %v1199 = vadd.f32 0.0, %v1198
        %v1200 = vpop.f32.mrf.mxu0
        %1201 = vmatprep.mubr.f32.mxu0 0.0
        %1202 = vmatmul.mubr.f32.gmra.mxu0 %v1080
        %v1203 = vpop.f32.mrf.mxu0
        %v1204 = vadd.f32 0.0, %v1203
        %v1205 = vpop.f32.mrf.mxu0
        %1206 = vmatprep.mubr.f32.mxu0 0.0
        %1207 = vmatmul.mubr.f32.gmra.mxu0 %v1083
        %v1208 = vpop.f32.mrf.mxu0
        %v1209 = vadd.f32 0.0, %v1208
        %v1210 = vpop.f32.mrf.mxu0
        %1211 = vmatprep.mubr.f32.mxu0 0.0
        %1212 = vmatmul.mubr.f32.gmra.mxu0 %v1086
        %v1213 = vpop.f32.mrf.mxu0
        %v1214 = vadd.f32 0.0, %v1213
        %v1215 = vpop.f32.mrf.mxu0
        %1216 = vmatprep.mubr.f32.mxu0 0.0
        %1217 = vmatmul.mubr.f32.gmra.mxu0 %v1089
        %v1218 = vpop.f32.mrf.mxu0
        %v1219 = vadd.f32 0.0, %v1218
        %v1220 = vpop.f32.mrf.mxu0
        %1221 = vmatprep.mubr.f32.mxu0 0.0
        %1222 = vmatmul.mubr.f32.gmra.mxu0 %v1092
        %v1223 = vpop.f32.mrf.mxu0
        %v1224 = vadd.f32 0.0, %v1223
        %v1225 = vpop.f32.mrf.mxu0
        %1226 = vmatprep.mubr.f32.mxu0 0.0
        %1227 = vmatmul.mubr.f32.gmra.mxu0 %v1095
        %v1228 = vpop.f32.mrf.mxu0
        %v1229 = vadd.f32 0.0, %v1228
        %v1230 = vpop.f32.mrf.mxu0
        %1231 = vmatprep.mubr.f32.mxu0 0.0
        %1232 = vmatmul.mubr.f32.gmra.mxu0 %v1098
        %v1233 = vpop.f32.mrf.mxu0
        %v1234 = vadd.f32 0.0, %v1233
        %v1235 = vpop.f32.mrf.mxu0
        %1236 = vmatprep.mubr.f32.mxu0 0.0
        %1237 = vmatmul.mubr.f32.gmra.mxu0 %v1101
        %v1238 = vpop.f32.mrf.mxu0
        %v1239 = vadd.f32 0.0, %v1238
        %v1240 = vpop.f32.mrf.mxu0
        %1241 = vmatprep.mubr.f32.mxu0 0.0
        %1242 = vmatmul.mubr.f32.gmra.mxu0 %v1104
        %v1243 = vpop.f32.mrf.mxu0
        %v1244 = vadd.f32 0.0, %v1243
        %v1245 = vpop.f32.mrf.mxu0
        %1246 = vmatprep.mubr.f32.mxu0 0.0
        %1247 = vmatmul.mubr.f32.gmra.mxu0 %v1107
        %v1248 = vpop.f32.mrf.mxu0
        %v1249 = vadd.f32 0.0, %v1248
        %v1250 = vpop.f32.mrf.mxu0
        %1251 = vmatprep.mubr.f32.mxu0 0.0
        %1252 = vmatmul.mubr.f32.gmra.mxu0 %v1110
        %v1253 = vpop.f32.mrf.mxu0
        %v1254 = vadd.f32 0.0, %v1253
        %v1255 = vpop.f32.mrf.mxu0
        %1256 = vdwg.mxu0
        %v1257 = vld [vmem:[%s14] sm:$0xff]
        %v1258 = vld [vmem:[%s14 + $0x8] sm:$0xff]
        %vm1259 = vcmask 130048
        %v1261 = vsel %vm1259, %v1046, 0
        %v1264 = vsel %vm1259, %v1047, 0
        %v1267 = vsel %vm1259, %v1048, 0
        %v1270 = vsel %vm1259, %v1049, 0
        %v1273 = vsel %vm1259, %v1050, 0
        %v1276 = vsel %vm1259, %v1051, 0
        %v1279 = vsel %vm1259, %v1052, 0
        %v1282 = vsel %vm1259, %v1053, 0
        %v1285 = vsel %vm1259, %v1054, 0
        %v1288 = vsel %vm1259, %v1055, 0
        %v1291 = vsel %vm1259, %v1056, 0
        %v1294 = vsel %vm1259, %v1057, 0
        %v1297 = vsel %vm1259, %v1058, 0
        %v1300 = vsel %vm1259, %v1059, 0
        %v1303 = vsel %vm1259, %v1060, 0
        %v1306 = vsel %vm1259, %v1061, 0
        %1308 = vmatprep.subr.mxu0 0.0
        %1309 = vmatpush1.msra.mxu0 0.0
        %1310 = vmatprep.subr.mxu0 0.0
        %1311 = vmatpush1.msra.mxu0 0.0
        %1312 = vmatprep.subr.mxu0 0.0
        %1313 = vmatpush1.msra.mxu0 0.0
        %1314 = vmatprep.subr.mxu0 0.0
        %1315 = vmatpush1.msra.mxu0 0.0
        %1316 = vmatprep.subr.mxu0 0.0
        %1317 = vmatpush1.msra.mxu0 0.0
        %1318 = vmatprep.subr.mxu0 0.0
        %1319 = vmatpush1.msra.mxu0 0.0
        %1320 = vmatprep.subr.mxu0 0.0
        %1321 = vmatpush1.msra.mxu0 0.0
        %1322 = vmatprep.subr.mxu0 0.0
        %1323 = vmatpush1.msra.mxu0 0.0
        %1324 = vmatprep.subr.mxu0 0.0
        %1325 = vmatpush1.msra.mxu0 0.0
        %1326 = vmatprep.subr.mxu0 0.0
        %1327 = vmatpush1.msra.mxu0 0.0
        %1328 = vmatprep.subr.mxu0 0.0
        %1329 = vmatpush1.msra.mxu0 0.0
        %1330 = vmatprep.subr.mxu0 0.0
        %1331 = vmatpush1.msra.mxu0 0.0
        %1332 = vmatprep.subr.mxu0 0.0
        %1333 = vmatpush1.msra.mxu0 0.0
        %1334 = vmatprep.subr.mxu0 0.0
        %1335 = vmatpush1.msra.mxu0 0.0
        %1336 = vmatprep.subr.mxu0 0.0
        %1337 = vmatpush1.msra.mxu0 %v1258
        %1338 = vmatprep.subr.mxu0 0.0
        %1339 = vmatpush1.msra.mxu0 %v1257
        %1340 = vmatprep.subr.mxu0 0.0
        %1341 = vmatpush2.msra.mxu0 0.0
        %1342 = vmatprep.subr.mxu0 0.0
        %1343 = vmatpush2.msra.mxu0 0.0
        %1344 = vmatprep.subr.mxu0 0.0
        %1345 = vmatpush2.msra.mxu0 0.0
        %1346 = vmatprep.subr.mxu0 0.0
        %1347 = vmatpush2.msra.mxu0 0.0
        %1348 = vmatprep.subr.mxu0 0.0
        %1349 = vmatpush2.msra.mxu0 0.0
        %1350 = vmatprep.subr.mxu0 0.0
        %1351 = vmatpush2.msra.mxu0 0.0
        %1352 = vmatprep.subr.mxu0 0.0
        %1353 = vmatpush2.msra.mxu0 0.0
        %1354 = vmatprep.subr.mxu0 0.0
        %1355 = vmatpush2.msra.mxu0 0.0
        %1356 = vmatprep.subr.mxu0 0.0
        %1357 = vmatpush2.msra.mxu0 0.0
        %1358 = vmatprep.subr.mxu0 0.0
        %1359 = vmatpush2.msra.mxu0 0.0
        %1360 = vmatprep.subr.mxu0 0.0
        %1361 = vmatpush2.msra.mxu0 0.0
        %1362 = vmatprep.subr.mxu0 0.0
        %1363 = vmatpush2.msra.mxu0 0.0
        %1364 = vmatprep.subr.mxu0 0.0
        %1365 = vmatpush2.msra.mxu0 0.0
        %1366 = vmatprep.subr.mxu0 0.0
        %1367 = vmatpush2.msra.mxu0 0.0
        %1368 = vmatprep.subr.mxu0 0.0
        %1369 = vmatpush2.msra.mxu0 0.0
        %1370 = vmatprep.subr.mxu0 0.0
        %1371 = vmatpush2.msra.mxu0 0.0
        %1372 = vmatprep.mubr.f32.mxu0 0.0
        %1373 = vmatmul.mubr.f32.gmra.mxu0 %v1261
        %v1374 = vpop.f32.mrf.mxu0
        %v1375 = vadd.f32 0.0, %v1374
        %v1376 = vpop.f32.mrf.mxu0
        %1377 = vmatprep.mubr.f32.mxu0 0.0
        %1378 = vmatmul.mubr.f32.gmra.mxu0 %v1264
        %v1379 = vpop.f32.mrf.mxu0
        %v1380 = vadd.f32 0.0, %v1379
        %v1381 = vpop.f32.mrf.mxu0
        %1382 = vmatprep.mubr.f32.mxu0 0.0
        %1383 = vmatmul.mubr.f32.gmra.mxu0 %v1267
        %v1384 = vpop.f32.mrf.mxu0
        %v1385 = vadd.f32 0.0, %v1384
        %v1386 = vpop.f32.mrf.mxu0
        %1387 = vmatprep.mubr.f32.mxu0 0.0
        %1388 = vmatmul.mubr.f32.gmra.mxu0 %v1270
        %v1389 = vpop.f32.mrf.mxu0
        %v1390 = vadd.f32 0.0, %v1389
        %v1391 = vpop.f32.mrf.mxu0
        %1392 = vmatprep.mubr.f32.mxu0 0.0
        %1393 = vmatmul.mubr.f32.gmra.mxu0 %v1273
        %v1394 = vpop.f32.mrf.mxu0
        %v1395 = vadd.f32 0.0, %v1394
        %v1396 = vpop.f32.mrf.mxu0
        %1397 = vmatprep.mubr.f32.mxu0 0.0
        %1398 = vmatmul.mubr.f32.gmra.mxu0 %v1276
        %v1399 = vpop.f32.mrf.mxu0
        %v1400 = vadd.f32 0.0, %v1399
        %v1401 = vpop.f32.mrf.mxu0
        %1402 = vmatprep.mubr.f32.mxu0 0.0
        %1403 = vmatmul.mubr.f32.gmra.mxu0 %v1279
        %v1404 = vpop.f32.mrf.mxu0
        %v1405 = vadd.f32 0.0, %v1404
        %v1406 = vpop.f32.mrf.mxu0
        %1407 = vmatprep.mubr.f32.mxu0 0.0
        %1408 = vmatmul.mubr.f32.gmra.mxu0 %v1282
        %v1409 = vpop.f32.mrf.mxu0
        %v1410 = vadd.f32 0.0, %v1409
        %v1411 = vpop.f32.mrf.mxu0
        %1412 = vmatprep.mubr.f32.mxu0 0.0
        %1413 = vmatmul.mubr.f32.gmra.mxu0 %v1285
        %v1414 = vpop.f32.mrf.mxu0
        %v1415 = vadd.f32 0.0, %v1414
        %v1416 = vpop.f32.mrf.mxu0
        %1417 = vmatprep.mubr.f32.mxu0 0.0
        %1418 = vmatmul.mubr.f32.gmra.mxu0 %v1288
        %v1419 = vpop.f32.mrf.mxu0
        %v1420 = vadd.f32 0.0, %v1419
        %v1421 = vpop.f32.mrf.mxu0
        %1422 = vmatprep.mubr.f32.mxu0 0.0
        %1423 = vmatmul.mubr.f32.gmra.mxu0 %v1291
        %v1424 = vpop.f32.mrf.mxu0
        %v1425 = vadd.f32 0.0, %v1424
        %v1426 = vpop.f32.mrf.mxu0
        %1427 = vmatprep.mubr.f32.mxu0 0.0
        %1428 = vmatmul.mubr.f32.gmra.mxu0 %v1294
        %v1429 = vpop.f32.mrf.mxu0
        %v1430 = vadd.f32 0.0, %v1429
        %v1431 = vpop.f32.mrf.mxu0
        %1432 = vmatprep.mubr.f32.mxu0 0.0
        %1433 = vmatmul.mubr.f32.gmra.mxu0 %v1297
        %v1434 = vpop.f32.mrf.mxu0
        %v1435 = vadd.f32 0.0, %v1434
        %v1436 = vpop.f32.mrf.mxu0
        %1437 = vmatprep.mubr.f32.mxu0 0.0
        %1438 = vmatmul.mubr.f32.gmra.mxu0 %v1300
        %v1439 = vpop.f32.mrf.mxu0
        %v1440 = vadd.f32 0.0, %v1439
        %v1441 = vpop.f32.mrf.mxu0
        %1442 = vmatprep.mubr.f32.mxu0 0.0
        %1443 = vmatmul.mubr.f32.gmra.mxu0 %v1303
        %v1444 = vpop.f32.mrf.mxu0
        %v1445 = vadd.f32 0.0, %v1444
        %v1446 = vpop.f32.mrf.mxu0
        %1447 = vmatprep.mubr.f32.mxu0 0.0
        %1448 = vmatmul.mubr.f32.gmra.mxu0 %v1306
        %v1449 = vpop.f32.mrf.mxu0
        %v1450 = vadd.f32 0.0, %v1449
        %v1451 = vpop.f32.mrf.mxu0
        %1452 = vdwg.mxu0
        %v1453 = vmul.f32 %v1179, %v1375
        %v1454 = vmul.f32 %v1184, %v1380
        %v1455 = vmul.f32 %v1189, %v1385
        %v1456 = vmul.f32 %v1194, %v1390
        %v1457 = vmul.f32 %v1199, %v1395
        %v1458 = vmul.f32 %v1204, %v1400
        %v1459 = vmul.f32 %v1209, %v1405
        %v1460 = vmul.f32 %v1214, %v1410
        %v1461 = vmul.f32 %v1219, %v1415
        %v1462 = vmul.f32 %v1224, %v1420
        %v1463 = vmul.f32 %v1229, %v1425
        %v1464 = vmul.f32 %v1234, %v1430
        %v1465 = vmul.f32 %v1239, %v1435
        %v1466 = vmul.f32 %v1244, %v1440
        %v1467 = vmul.f32 %v1249, %v1445
        %v1468 = vmul.f32 %v1254, %v1450
        %v1469 = vld [vmem:[%s7] sm:$0xff]
        %v1470 = vld [vmem:[%s7 + $0x8] sm:$0xff]
        %v1471 = vld [vmem:[%s7 + $0x10] sm:$0xff]
        %v1472 = vld [vmem:[%s7 + $0x18] sm:$0xff]
        %v1473 = vld [vmem:[%s7 + $0x20] sm:$0xff]
        %v1474 = vld [vmem:[%s7 + $0x28] sm:$0xff]
        %v1475 = vld [vmem:[%s7 + $0x30] sm:$0xff]
        %v1476 = vld [vmem:[%s7 + $0x38] sm:$0xff]
        %v1477 = vld [vmem:[%s7 + $0x40] sm:$0xff]
        %v1478 = vld [vmem:[%s7 + $0x48] sm:$0xff]
        %v1479 = vld [vmem:[%s7 + $0x50] sm:$0xff]
        %v1480 = vld [vmem:[%s7 + $0x58] sm:$0xff]
        %v1481 = vld [vmem:[%s7 + $0x60] sm:$0xff]
        %v1482 = vld [vmem:[%s7 + $0x68] sm:$0xff]
        %v1483 = vld [vmem:[%s7 + $0x70] sm:$0xff]
        %v1484 = vld [vmem:[%s7 + $0x78] sm:$0xff]
        %1485 = vmatprep.subr.mxu0 0.0
        %1486 = vmatpush1.msra.mxu0 %v1484
        %1487 = vmatprep.subr.mxu0 0.0
        %1488 = vmatpush1.msra.mxu0 %v1483
        %1489 = vmatprep.subr.mxu0 0.0
        %1490 = vmatpush1.msra.mxu0 %v1482
        %1491 = vmatprep.subr.mxu0 0.0
        %1492 = vmatpush1.msra.mxu0 %v1481
        %1493 = vmatprep.subr.mxu0 0.0
        %1494 = vmatpush1.msra.mxu0 %v1480
        %1495 = vmatprep.subr.mxu0 0.0
        %1496 = vmatpush1.msra.mxu0 %v1479
        %1497 = vmatprep.subr.mxu0 0.0
        %1498 = vmatpush1.msra.mxu0 %v1478
        %1499 = vmatprep.subr.mxu0 0.0
        %1500 = vmatpush1.msra.mxu0 %v1477
        %1501 = vmatprep.subr.mxu0 0.0
        %1502 = vmatpush1.msra.mxu0 %v1476
        %1503 = vmatprep.subr.mxu0 0.0
        %1504 = vmatpush1.msra.mxu0 %v1475
        %1505 = vmatprep.subr.mxu0 0.0
        %1506 = vmatpush1.msra.mxu0 %v1474
        %1507 = vmatprep.subr.mxu0 0.0
        %1508 = vmatpush1.msra.mxu0 %v1473
        %1509 = vmatprep.subr.mxu0 0.0
        %1510 = vmatpush1.msra.mxu0 %v1472
        %1511 = vmatprep.subr.mxu0 0.0
        %1512 = vmatpush1.msra.mxu0 %v1471
        %1513 = vmatprep.subr.mxu0 0.0
        %1514 = vmatpush1.msra.mxu0 %v1470
        %1515 = vmatprep.subr.mxu0 0.0
        %1516 = vmatpush1.msra.mxu0 %v1469
        %1517 = vmatprep.subr.mxu0 0.0
        %1518 = vmatpush2.msra.mxu0 0.0
        %1519 = vmatprep.subr.mxu0 0.0
        %1520 = vmatpush2.msra.mxu0 0.0
        %1521 = vmatprep.subr.mxu0 0.0
        %1522 = vmatpush2.msra.mxu0 0.0
        %1523 = vmatprep.subr.mxu0 0.0
        %1524 = vmatpush2.msra.mxu0 0.0
        %1525 = vmatprep.subr.mxu0 0.0
        %1526 = vmatpush2.msra.mxu0 0.0
        %1527 = vmatprep.subr.mxu0 0.0
        %1528 = vmatpush2.msra.mxu0 0.0
        %1529 = vmatprep.subr.mxu0 0.0
        %1530 = vmatpush2.msra.mxu0 0.0
        %1531 = vmatprep.subr.mxu0 0.0
        %1532 = vmatpush2.msra.mxu0 0.0
        %1533 = vmatprep.subr.mxu0 0.0
        %1534 = vmatpush2.msra.mxu0 0.0
        %1535 = vmatprep.subr.mxu0 0.0
        %1536 = vmatpush2.msra.mxu0 0.0
        %1537 = vmatprep.subr.mxu0 0.0
        %1538 = vmatpush2.msra.mxu0 0.0
        %1539 = vmatprep.subr.mxu0 0.0
        %1540 = vmatpush2.msra.mxu0 0.0
        %1541 = vmatprep.subr.mxu0 0.0
        %1542 = vmatpush2.msra.mxu0 0.0
        %1543 = vmatprep.subr.mxu0 0.0
        %1544 = vmatpush2.msra.mxu0 0.0
        %1545 = vmatprep.subr.mxu0 0.0
        %1546 = vmatpush2.msra.mxu0 0.0
        %1547 = vmatprep.subr.mxu0 0.0
        %1548 = vmatpush2.msra.mxu0 0.0
        %1549 = vmatprep.mubr.f32.mxu0 0.0
        %1550 = vmatmul.mubr.f32.gmra.mxu0 %v1453
        %v1551 = vpop.f32.mrf.mxu0
        %v1552 = vadd.f32 0.0, %v1551
        %v1553 = vpop.f32.mrf.mxu0
        %1554 = vmatprep.mubr.f32.mxu0 0.0
        %1555 = vmatmul.mubr.f32.gmra.mxu0 %v1454
        %v1556 = vpop.f32.mrf.mxu0
        %v1557 = vadd.f32 0.0, %v1556
        %v1558 = vpop.f32.mrf.mxu0
        %1559 = vmatprep.mubr.f32.mxu0 0.0
        %1560 = vmatmul.mubr.f32.gmra.mxu0 %v1455
        %v1561 = vpop.f32.mrf.mxu0
        %v1562 = vadd.f32 0.0, %v1561
        %v1563 = vpop.f32.mrf.mxu0
        %1564 = vmatprep.mubr.f32.mxu0 0.0
        %1565 = vmatmul.mubr.f32.gmra.mxu0 %v1456
        %v1566 = vpop.f32.mrf.mxu0
        %v1567 = vadd.f32 0.0, %v1566
        %v1568 = vpop.f32.mrf.mxu0
        %1569 = vmatprep.mubr.f32.mxu0 0.0
        %1570 = vmatmul.mubr.f32.gmra.mxu0 %v1457
        %v1571 = vpop.f32.mrf.mxu0
        %v1572 = vadd.f32 0.0, %v1571
        %v1573 = vpop.f32.mrf.mxu0
        %1574 = vmatprep.mubr.f32.mxu0 0.0
        %1575 = vmatmul.mubr.f32.gmra.mxu0 %v1458
        %v1576 = vpop.f32.mrf.mxu0
        %v1577 = vadd.f32 0.0, %v1576
        %v1578 = vpop.f32.mrf.mxu0
        %1579 = vmatprep.mubr.f32.mxu0 0.0
        %1580 = vmatmul.mubr.f32.gmra.mxu0 %v1459
        %v1581 = vpop.f32.mrf.mxu0
        %v1582 = vadd.f32 0.0, %v1581
        %v1583 = vpop.f32.mrf.mxu0
        %1584 = vmatprep.mubr.f32.mxu0 0.0
        %1585 = vmatmul.mubr.f32.gmra.mxu0 %v1460
        %v1586 = vpop.f32.mrf.mxu0
        %v1587 = vadd.f32 0.0, %v1586
        %v1588 = vpop.f32.mrf.mxu0
        %1589 = vmatprep.mubr.f32.mxu0 0.0
        %1590 = vmatmul.mubr.f32.gmra.mxu0 %v1461
        %v1591 = vpop.f32.mrf.mxu0
        %v1592 = vadd.f32 0.0, %v1591
        %v1593 = vpop.f32.mrf.mxu0
        %1594 = vmatprep.mubr.f32.mxu0 0.0
        %1595 = vmatmul.mubr.f32.gmra.mxu0 %v1462
        %v1596 = vpop.f32.mrf.mxu0
        %v1597 = vadd.f32 0.0, %v1596
        %v1598 = vpop.f32.mrf.mxu0
        %1599 = vmatprep.mubr.f32.mxu0 0.0
        %1600 = vmatmul.mubr.f32.gmra.mxu0 %v1463
        %v1601 = vpop.f32.mrf.mxu0
        %v1602 = vadd.f32 0.0, %v1601
        %v1603 = vpop.f32.mrf.mxu0
        %1604 = vmatprep.mubr.f32.mxu0 0.0
        %1605 = vmatmul.mubr.f32.gmra.mxu0 %v1464
        %v1606 = vpop.f32.mrf.mxu0
        %v1607 = vadd.f32 0.0, %v1606
        %v1608 = vpop.f32.mrf.mxu0
        %1609 = vmatprep.mubr.f32.mxu0 0.0
        %1610 = vmatmul.mubr.f32.gmra.mxu0 %v1465
        %v1611 = vpop.f32.mrf.mxu0
        %v1612 = vadd.f32 0.0, %v1611
        %v1613 = vpop.f32.mrf.mxu0
        %1614 = vmatprep.mubr.f32.mxu0 0.0
        %1615 = vmatmul.mubr.f32.gmra.mxu0 %v1466
        %v1616 = vpop.f32.mrf.mxu0
        %v1617 = vadd.f32 0.0, %v1616
        %v1618 = vpop.f32.mrf.mxu0
        %1619 = vmatprep.mubr.f32.mxu0 0.0
        %1620 = vmatmul.mubr.f32.gmra.mxu0 %v1467
        %v1621 = vpop.f32.mrf.mxu0
        %v1622 = vadd.f32 0.0, %v1621
        %v1623 = vpop.f32.mrf.mxu0
        %1624 = vmatprep.mubr.f32.mxu0 0.0
        %1625 = vmatmul.mubr.f32.gmra.mxu0 %v1468
        %v1626 = vpop.f32.mrf.mxu0
        %v1627 = vadd.f32 0.0, %v1626
        %v1628 = vpop.f32.mrf.mxu0
        %1629 = vdwg.mxu0
        %v1630 = vld [vmem:[%s778] sm:$0xff]
        %v1631 = vld [vmem:[%s778 + $0x8] sm:$0xff]
        %v1632 = vld [vmem:[%s778 + $0x10] sm:$0xff]
        %v1633 = vld [vmem:[%s778 + $0x18] sm:$0xff]
        %v1634 = vld [vmem:[%s778 + $0x20] sm:$0xff]
        %v1635 = vld [vmem:[%s778 + $0x28] sm:$0xff]
        %v1636 = vld [vmem:[%s778 + $0x30] sm:$0xff]
        %v1637 = vld [vmem:[%s778 + $0x38] sm:$0xff]
        %v1638 = vld [vmem:[%s778 + $0x40] sm:$0xff]
        %v1639 = vld [vmem:[%s778 + $0x48] sm:$0xff]
        %v1640 = vld [vmem:[%s778 + $0x50] sm:$0xff]
        %v1641 = vld [vmem:[%s778 + $0x58] sm:$0xff]
        %v1642 = vld [vmem:[%s778 + $0x60] sm:$0xff]
        %v1643 = vld [vmem:[%s778 + $0x68] sm:$0xff]
        %v1644 = vld [vmem:[%s778 + $0x70] sm:$0xff]
        %v1645 = vld [vmem:[%s778 + $0x78] sm:$0xff]
        %v1646 = vld [vmem:[%s15] sm:$0xff]
        %v1647 = vld [vmem:[%s15 + $0x8] sm:$0xff]
        %v1648 = vld [vmem:[%s15 + $0x10] sm:$0x1]
        %v1649 = vld [vmem:[%s15 + $0x18] sm:$0x1]
        %vm1650 = vcmask 72704
        %v1652 = vsel %vm1650, %v1630, 0
        %v1655 = vsel %vm1650, %v1631, 0
        %v1658 = vsel %vm1650, %v1632, 0
        %v1661 = vsel %vm1650, %v1633, 0
        %v1664 = vsel %vm1650, %v1634, 0
        %v1667 = vsel %vm1650, %v1635, 0
        %v1670 = vsel %vm1650, %v1636, 0
        %v1673 = vsel %vm1650, %v1637, 0
        %v1676 = vsel %vm1650, %v1638, 0
        %v1679 = vsel %vm1650, %v1639, 0
        %v1682 = vsel %vm1650, %v1640, 0
        %v1685 = vsel %vm1650, %v1641, 0
        %v1688 = vsel %vm1650, %v1642, 0
        %v1691 = vsel %vm1650, %v1643, 0
        %v1694 = vsel %vm1650, %v1644, 0
        %v1697 = vsel %vm1650, %v1645, 0
        %vm1699 = vcmask 1040384
        %v1701 = vsel %vm1699, %v1648, 0
        %v1704 = vsel %vm1699, %v1649, 0
        %1706 = vmatprep.subr.mxu0 0.0
        %1707 = vmatpush1.msra.mxu0 0.0
        %1708 = vmatprep.subr.mxu0 0.0
        %1709 = vmatpush1.msra.mxu0 0.0
        %1710 = vmatprep.subr.mxu0 0.0
        %1711 = vmatpush1.msra.mxu0 0.0
        %1712 = vmatprep.subr.mxu0 0.0
        %1713 = vmatpush1.msra.mxu0 0.0
        %1714 = vmatprep.subr.mxu0 0.0
        %1715 = vmatpush1.msra.mxu0 0.0
        %1716 = vmatprep.subr.mxu0 0.0
        %1717 = vmatpush1.msra.mxu0 0.0
        %1718 = vmatprep.subr.mxu0 0.0
        %1719 = vmatpush1.msra.mxu0 0.0
        %1720 = vmatprep.subr.mxu0 0.0
        %1721 = vmatpush1.msra.mxu0 0.0
        %1722 = vmatprep.subr.mxu0 0.0
        %1723 = vmatpush1.msra.mxu0 0.0
        %1724 = vmatprep.subr.mxu0 0.0
        %1725 = vmatpush1.msra.mxu0 0.0
        %1726 = vmatprep.subr.mxu0 0.0
        %1727 = vmatpush1.msra.mxu0 0.0
        %1728 = vmatprep.subr.mxu0 0.0
        %1729 = vmatpush1.msra.mxu0 0.0
        %1730 = vmatprep.subr.mxu0 0.0
        %1731 = vmatpush1.msra.mxu0 0.0
        %1732 = vmatprep.subr.mxu0 0.0
        %1733 = vmatpush1.msra.mxu0 0.0
        %1734 = vmatprep.subr.mxu0 %v1704
        %1735 = vmatpush1.msra.mxu0 %v1701
        %1736 = vmatprep.subr.mxu0 %v1647
        %1737 = vmatpush1.msra.mxu0 %v1646
        %1738 = vmatprep.subr.mxu0 0.0
        %1739 = vmatpush2.msra.mxu0 0.0
        %1740 = vmatprep.subr.mxu0 0.0
        %1741 = vmatpush2.msra.mxu0 0.0
        %1742 = vmatprep.subr.mxu0 0.0
        %1743 = vmatpush2.msra.mxu0 0.0
        %1744 = vmatprep.subr.mxu0 0.0
        %1745 = vmatpush2.msra.mxu0 0.0
        %1746 = vmatprep.subr.mxu0 0.0
        %1747 = vmatpush2.msra.mxu0 0.0
        %1748 = vmatprep.subr.mxu0 0.0
        %1749 = vmatpush2.msra.mxu0 0.0
        %1750 = vmatprep.subr.mxu0 0.0
        %1751 = vmatpush2.msra.mxu0 0.0
        %1752 = vmatprep.subr.mxu0 0.0
        %1753 = vmatpush2.msra.mxu0 0.0
        %1754 = vmatprep.subr.mxu0 0.0
        %1755 = vmatpush2.msra.mxu0 0.0
        %1756 = vmatprep.subr.mxu0 0.0
        %1757 = vmatpush2.msra.mxu0 0.0
        %1758 = vmatprep.subr.mxu0 0.0
        %1759 = vmatpush2.msra.mxu0 0.0
        %1760 = vmatprep.subr.mxu0 0.0
        %1761 = vmatpush2.msra.mxu0 0.0
        %1762 = vmatprep.subr.mxu0 0.0
        %1763 = vmatpush2.msra.mxu0 0.0
        %1764 = vmatprep.subr.mxu0 0.0
        %1765 = vmatpush2.msra.mxu0 0.0
        %1766 = vmatprep.subr.mxu0 0.0
        %1767 = vmatpush2.msra.mxu0 0.0
        %1768 = vmatprep.subr.mxu0 0.0
        %1769 = vmatpush2.msra.mxu0 0.0
        %1770 = vmatprep.mubr.f32.mxu0 0.0
        %1771 = vmatmul.mubr.f32.gmra.mxu0 %v1652
        %v1772 = vpop.f32.mrf.mxu0
        %v1773 = vadd.f32 0.0, %v1772
        %v1774 = vpop.f32.mrf.mxu0
        %v1775 = vadd.f32 0.0, %v1774
        %1776 = vmatprep.mubr.f32.mxu0 0.0
        %1777 = vmatmul.mubr.f32.gmra.mxu0 %v1655
        %v1778 = vpop.f32.mrf.mxu0
        %v1779 = vadd.f32 0.0, %v1778
        %v1780 = vpop.f32.mrf.mxu0
        %v1781 = vadd.f32 0.0, %v1780
        %1782 = vmatprep.mubr.f32.mxu0 0.0
        %1783 = vmatmul.mubr.f32.gmra.mxu0 %v1658
        %v1784 = vpop.f32.mrf.mxu0
        %v1785 = vadd.f32 0.0, %v1784
        %v1786 = vpop.f32.mrf.mxu0
        %v1787 = vadd.f32 0.0, %v1786
        %1788 = vmatprep.mubr.f32.mxu0 0.0
        %1789 = vmatmul.mubr.f32.gmra.mxu0 %v1661
        %v1790 = vpop.f32.mrf.mxu0
        %v1791 = vadd.f32 0.0, %v1790
        %v1792 = vpop.f32.mrf.mxu0
        %v1793 = vadd.f32 0.0, %v1792
        %1794 = vmatprep.mubr.f32.mxu0 0.0
        %1795 = vmatmul.mubr.f32.gmra.mxu0 %v1664
        %v1796 = vpop.f32.mrf.mxu0
        %v1797 = vadd.f32 0.0, %v1796
        %v1798 = vpop.f32.mrf.mxu0
        %v1799 = vadd.f32 0.0, %v1798
        %1800 = vmatprep.mubr.f32.mxu0 0.0
        %1801 = vmatmul.mubr.f32.gmra.mxu0 %v1667
        %v1802 = vpop.f32.mrf.mxu0
        %v1803 = vadd.f32 0.0, %v1802
        %v1804 = vpop.f32.mrf.mxu0
        %v1805 = vadd.f32 0.0, %v1804
        %1806 = vmatprep.mubr.f32.mxu0 0.0
        %1807 = vmatmul.mubr.f32.gmra.mxu0 %v1670
        %v1808 = vpop.f32.mrf.mxu0
        %v1809 = vadd.f32 0.0, %v1808
        %v1810 = vpop.f32.mrf.mxu0
        %v1811 = vadd.f32 0.0, %v1810
        %1812 = vmatprep.mubr.f32.mxu0 0.0
        %1813 = vmatmul.mubr.f32.gmra.mxu0 %v1673
        %v1814 = vpop.f32.mrf.mxu0
        %v1815 = vadd.f32 0.0, %v1814
        %v1816 = vpop.f32.mrf.mxu0
        %v1817 = vadd.f32 0.0, %v1816
        %1818 = vmatprep.mubr.f32.mxu0 0.0
        %1819 = vmatmul.mubr.f32.gmra.mxu0 %v1676
        %v1820 = vpop.f32.mrf.mxu0
        %v1821 = vadd.f32 0.0, %v1820
        %v1822 = vpop.f32.mrf.mxu0
        %v1823 = vadd.f32 0.0, %v1822
        %1824 = vmatprep.mubr.f32.mxu0 0.0
        %1825 = vmatmul.mubr.f32.gmra.mxu0 %v1679
        %v1826 = vpop.f32.mrf.mxu0
        %v1827 = vadd.f32 0.0, %v1826
        %v1828 = vpop.f32.mrf.mxu0
        %v1829 = vadd.f32 0.0, %v1828
        %1830 = vmatprep.mubr.f32.mxu0 0.0
        %1831 = vmatmul.mubr.f32.gmra.mxu0 %v1682
        %v1832 = vpop.f32.mrf.mxu0
        %v1833 = vadd.f32 0.0, %v1832
        %v1834 = vpop.f32.mrf.mxu0
        %v1835 = vadd.f32 0.0, %v1834
        %1836 = vmatprep.mubr.f32.mxu0 0.0
        %1837 = vmatmul.mubr.f32.gmra.mxu0 %v1685
        %v1838 = vpop.f32.mrf.mxu0
        %v1839 = vadd.f32 0.0, %v1838
        %v1840 = vpop.f32.mrf.mxu0
        %v1841 = vadd.f32 0.0, %v1840
        %1842 = vmatprep.mubr.f32.mxu0 0.0
        %1843 = vmatmul.mubr.f32.gmra.mxu0 %v1688
        %v1844 = vpop.f32.mrf.mxu0
        %v1845 = vadd.f32 0.0, %v1844
        %v1846 = vpop.f32.mrf.mxu0
        %v1847 = vadd.f32 0.0, %v1846
        %1848 = vmatprep.mubr.f32.mxu0 0.0
        %1849 = vmatmul.mubr.f32.gmra.mxu0 %v1691
        %v1850 = vpop.f32.mrf.mxu0
        %v1851 = vadd.f32 0.0, %v1850
        %v1852 = vpop.f32.mrf.mxu0
        %v1853 = vadd.f32 0.0, %v1852
        %1854 = vmatprep.mubr.f32.mxu0 0.0
        %1855 = vmatmul.mubr.f32.gmra.mxu0 %v1694
        %v1856 = vpop.f32.mrf.mxu0
        %v1857 = vadd.f32 0.0, %v1856
        %v1858 = vpop.f32.mrf.mxu0
        %v1859 = vadd.f32 0.0, %v1858
        %1860 = vmatprep.mubr.f32.mxu0 0.0
        %1861 = vmatmul.mubr.f32.gmra.mxu0 %v1697
        %v1862 = vpop.f32.mrf.mxu0
        %v1863 = vadd.f32 0.0, %v1862
        %v1864 = vpop.f32.mrf.mxu0
        %v1865 = vadd.f32 0.0, %v1864
        %1866 = vdwg.mxu0
        %v1867 = vld [vmem:[%s16] sm:$0xff]
        %v1868 = vld [vmem:[%s16 + $0x8] sm:$0xff]
        %v1869 = vld [vmem:[%s16 + $0x10] sm:$0xff]
        %v1870 = vld [vmem:[%s16 + $0x18] sm:$0xff]
        %v1872 = vsel %vm1259, %v1552, 0
        %v1875 = vsel %vm1259, %v1557, 0
        %v1878 = vsel %vm1259, %v1562, 0
        %v1881 = vsel %vm1259, %v1567, 0
        %v1884 = vsel %vm1259, %v1572, 0
        %v1887 = vsel %vm1259, %v1577, 0
        %v1890 = vsel %vm1259, %v1582, 0
        %v1893 = vsel %vm1259, %v1587, 0
        %v1896 = vsel %vm1259, %v1592, 0
        %v1899 = vsel %vm1259, %v1597, 0
        %v1902 = vsel %vm1259, %v1602, 0
        %v1905 = vsel %vm1259, %v1607, 0
        %v1908 = vsel %vm1259, %v1612, 0
        %v1911 = vsel %vm1259, %v1617, 0
        %v1914 = vsel %vm1259, %v1622, 0
        %v1917 = vsel %vm1259, %v1627, 0
        %1919 = vmatprep.subr.mxu0 0.0
        %1920 = vmatpush1.msra.mxu0 0.0
        %1921 = vmatprep.subr.mxu0 0.0
        %1922 = vmatpush1.msra.mxu0 0.0
        %1923 = vmatprep.subr.mxu0 0.0
        %1924 = vmatpush1.msra.mxu0 0.0
        %1925 = vmatprep.subr.mxu0 0.0
        %1926 = vmatpush1.msra.mxu0 0.0
        %1927 = vmatprep.subr.mxu0 0.0
        %1928 = vmatpush1.msra.mxu0 0.0
        %1929 = vmatprep.subr.mxu0 0.0
        %1930 = vmatpush1.msra.mxu0 0.0
        %1931 = vmatprep.subr.mxu0 0.0
        %1932 = vmatpush1.msra.mxu0 0.0
        %1933 = vmatprep.subr.mxu0 0.0
        %1934 = vmatpush1.msra.mxu0 0.0
        %1935 = vmatprep.subr.mxu0 0.0
        %1936 = vmatpush1.msra.mxu0 0.0
        %1937 = vmatprep.subr.mxu0 0.0
        %1938 = vmatpush1.msra.mxu0 0.0
        %1939 = vmatprep.subr.mxu0 0.0
        %1940 = vmatpush1.msra.mxu0 0.0
        %1941 = vmatprep.subr.mxu0 0.0
        %1942 = vmatpush1.msra.mxu0 0.0
        %1943 = vmatprep.subr.mxu0 0.0
        %1944 = vmatpush1.msra.mxu0 0.0
        %1945 = vmatprep.subr.mxu0 0.0
        %1946 = vmatpush1.msra.mxu0 0.0
        %1947 = vmatprep.subr.mxu0 %v1870
        %1948 = vmatpush1.msra.mxu0 %v1869
        %1949 = vmatprep.subr.mxu0 %v1868
        %1950 = vmatpush1.msra.mxu0 %v1867
        %1951 = vmatprep.subr.mxu0 0.0
        %1952 = vmatpush2.msra.mxu0 0.0
        %1953 = vmatprep.subr.mxu0 0.0
        %1954 = vmatpush2.msra.mxu0 0.0
        %1955 = vmatprep.subr.mxu0 0.0
        %1956 = vmatpush2.msra.mxu0 0.0
        %1957 = vmatprep.subr.mxu0 0.0
        %1958 = vmatpush2.msra.mxu0 0.0
        %1959 = vmatprep.subr.mxu0 0.0
        %1960 = vmatpush2.msra.mxu0 0.0
        %1961 = vmatprep.subr.mxu0 0.0
        %1962 = vmatpush2.msra.mxu0 0.0
        %1963 = vmatprep.subr.mxu0 0.0
        %1964 = vmatpush2.msra.mxu0 0.0
        %1965 = vmatprep.subr.mxu0 0.0
        %1966 = vmatpush2.msra.mxu0 0.0
        %1967 = vmatprep.subr.mxu0 0.0
        %1968 = vmatpush2.msra.mxu0 0.0
        %1969 = vmatprep.subr.mxu0 0.0
        %1970 = vmatpush2.msra.mxu0 0.0
        %1971 = vmatprep.subr.mxu0 0.0
        %1972 = vmatpush2.msra.mxu0 0.0
        %1973 = vmatprep.subr.mxu0 0.0
        %1974 = vmatpush2.msra.mxu0 0.0
        %1975 = vmatprep.subr.mxu0 0.0
        %1976 = vmatpush2.msra.mxu0 0.0
        %1977 = vmatprep.subr.mxu0 0.0
        %1978 = vmatpush2.msra.mxu0 0.0
        %1979 = vmatprep.subr.mxu0 0.0
        %1980 = vmatpush2.msra.mxu0 0.0
        %1981 = vmatprep.subr.mxu0 0.0
        %1982 = vmatpush2.msra.mxu0 0.0
        %1983 = vmatprep.mubr.f32.mxu0 0.0
        %1984 = vmatmul.mubr.f32.gmra.mxu0 %v1872
        %v1985 = vpop.f32.mrf.mxu0
        %v1986 = vadd.f32 0.0, %v1985
        %v1987 = vpop.f32.mrf.mxu0
        %v1988 = vadd.f32 0.0, %v1987
        %1989 = vmatprep.mubr.f32.mxu0 0.0
        %1990 = vmatmul.mubr.f32.gmra.mxu0 %v1875
        %v1991 = vpop.f32.mrf.mxu0
        %v1992 = vadd.f32 0.0, %v1991
        %v1993 = vpop.f32.mrf.mxu0
        %v1994 = vadd.f32 0.0, %v1993
        %1995 = vmatprep.mubr.f32.mxu0 0.0
        %1996 = vmatmul.mubr.f32.gmra.mxu0 %v1878
        %v1997 = vpop.f32.mrf.mxu0
        %v1998 = vadd.f32 0.0, %v1997
        %v1999 = vpop.f32.mrf.mxu0
        %v2000 = vadd.f32 0.0, %v1999
        %2001 = vmatprep.mubr.f32.mxu0 0.0
        %2002 = vmatmul.mubr.f32.gmra.mxu0 %v1881
        %v2003 = vpop.f32.mrf.mxu0
        %v2004 = vadd.f32 0.0, %v2003
        %v2005 = vpop.f32.mrf.mxu0
        %v2006 = vadd.f32 0.0, %v2005
        %2007 = vmatprep.mubr.f32.mxu0 0.0
        %2008 = vmatmul.mubr.f32.gmra.mxu0 %v1884
        %v2009 = vpop.f32.mrf.mxu0
        %v2010 = vadd.f32 0.0, %v2009
        %v2011 = vpop.f32.mrf.mxu0
        %v2012 = vadd.f32 0.0, %v2011
        %2013 = vmatprep.mubr.f32.mxu0 0.0
        %2014 = vmatmul.mubr.f32.gmra.mxu0 %v1887
        %v2015 = vpop.f32.mrf.mxu0
        %v2016 = vadd.f32 0.0, %v2015
        %v2017 = vpop.f32.mrf.mxu0
        %v2018 = vadd.f32 0.0, %v2017
        %2019 = vmatprep.mubr.f32.mxu0 0.0
        %2020 = vmatmul.mubr.f32.gmra.mxu0 %v1890
        %v2021 = vpop.f32.mrf.mxu0
        %v2022 = vadd.f32 0.0, %v2021
        %v2023 = vpop.f32.mrf.mxu0
        %v2024 = vadd.f32 0.0, %v2023
        %2025 = vmatprep.mubr.f32.mxu0 0.0
        %2026 = vmatmul.mubr.f32.gmra.mxu0 %v1893
        %v2027 = vpop.f32.mrf.mxu0
        %v2028 = vadd.f32 0.0, %v2027
        %v2029 = vpop.f32.mrf.mxu0
        %v2030 = vadd.f32 0.0, %v2029
        %2031 = vmatprep.mubr.f32.mxu0 0.0
        %2032 = vmatmul.mubr.f32.gmra.mxu0 %v1896
        %v2033 = vpop.f32.mrf.mxu0
        %v2034 = vadd.f32 0.0, %v2033
        %v2035 = vpop.f32.mrf.mxu0
        %v2036 = vadd.f32 0.0, %v2035
        %2037 = vmatprep.mubr.f32.mxu0 0.0
        %2038 = vmatmul.mubr.f32.gmra.mxu0 %v1899
        %v2039 = vpop.f32.mrf.mxu0
        %v2040 = vadd.f32 0.0, %v2039
        %v2041 = vpop.f32.mrf.mxu0
        %v2042 = vadd.f32 0.0, %v2041
        %2043 = vmatprep.mubr.f32.mxu0 0.0
        %2044 = vmatmul.mubr.f32.gmra.mxu0 %v1902
        %v2045 = vpop.f32.mrf.mxu0
        %v2046 = vadd.f32 0.0, %v2045
        %v2047 = vpop.f32.mrf.mxu0
        %v2048 = vadd.f32 0.0, %v2047
        %2049 = vmatprep.mubr.f32.mxu0 0.0
        %2050 = vmatmul.mubr.f32.gmra.mxu0 %v1905
        %v2051 = vpop.f32.mrf.mxu0
        %v2052 = vadd.f32 0.0, %v2051
        %v2053 = vpop.f32.mrf.mxu0
        %v2054 = vadd.f32 0.0, %v2053
        %2055 = vmatprep.mubr.f32.mxu0 0.0
        %2056 = vmatmul.mubr.f32.gmra.mxu0 %v1908
        %v2057 = vpop.f32.mrf.mxu0
        %v2058 = vadd.f32 0.0, %v2057
        %v2059 = vpop.f32.mrf.mxu0
        %v2060 = vadd.f32 0.0, %v2059
        %2061 = vmatprep.mubr.f32.mxu0 0.0
        %2062 = vmatmul.mubr.f32.gmra.mxu0 %v1911
        %v2063 = vpop.f32.mrf.mxu0
        %v2064 = vadd.f32 0.0, %v2063
        %v2065 = vpop.f32.mrf.mxu0
        %v2066 = vadd.f32 0.0, %v2065
        %2067 = vmatprep.mubr.f32.mxu0 0.0
        %2068 = vmatmul.mubr.f32.gmra.mxu0 %v1914
        %v2069 = vpop.f32.mrf.mxu0
        %v2070 = vadd.f32 0.0, %v2069
        %v2071 = vpop.f32.mrf.mxu0
        %v2072 = vadd.f32 0.0, %v2071
        %2073 = vmatprep.mubr.f32.mxu0 0.0
        %2074 = vmatmul.mubr.f32.gmra.mxu0 %v1917
        %v2075 = vpop.f32.mrf.mxu0
        %v2076 = vadd.f32 0.0, %v2075
        %v2077 = vpop.f32.mrf.mxu0
        %v2078 = vadd.f32 0.0, %v2077
        %2079 = vdwg.mxu0
        %v2080 = vmul.f32 %v1773, %v1986
        %v2081 = vmul.f32 %v1775, %v1988
        %v2082 = vmul.f32 %v1779, %v1992
        %v2083 = vmul.f32 %v1781, %v1994
        %v2084 = vmul.f32 %v1785, %v1998
        %v2085 = vmul.f32 %v1787, %v2000
        %v2086 = vmul.f32 %v1791, %v2004
        %v2087 = vmul.f32 %v1793, %v2006
        %v2088 = vmul.f32 %v1797, %v2010
        %v2089 = vmul.f32 %v1799, %v2012
        %v2090 = vmul.f32 %v1803, %v2016
        %v2091 = vmul.f32 %v1805, %v2018
        %v2092 = vmul.f32 %v1809, %v2022
        %v2093 = vmul.f32 %v1811, %v2024
        %v2094 = vmul.f32 %v1815, %v2028
        %v2095 = vmul.f32 %v1817, %v2030
        %v2096 = vmul.f32 %v1821, %v2034
        %v2097 = vmul.f32 %v1823, %v2036
        %v2098 = vmul.f32 %v1827, %v2040
        %v2099 = vmul.f32 %v1829, %v2042
        %v2100 = vmul.f32 %v1833, %v2046
        %v2101 = vmul.f32 %v1835, %v2048
        %v2102 = vmul.f32 %v1839, %v2052
        %v2103 = vmul.f32 %v1841, %v2054
        %v2104 = vmul.f32 %v1845, %v2058
        %v2105 = vmul.f32 %v1847, %v2060
        %v2106 = vmul.f32 %v1851, %v2064
        %v2107 = vmul.f32 %v1853, %v2066
        %v2108 = vmul.f32 %v1857, %v2070
        %v2109 = vmul.f32 %v1859, %v2072
        %v2110 = vmul.f32 %v1863, %v2076
        %v2111 = vmul.f32 %v1865, %v2078
        %s2112 = smul.u32 %s42, 8
        %v2113 = vlaneseq
        %v2114 = vshrl.u32 %v2113, 7
        %v2115 = vstv %s2112
        %v2116 = vadd.s32 %v2115, %v2114
        %v2117 = vld [vmem:[%s735] sm:$0x1]
        %v2118 = vlaneseq
        %v2119 = vshrl.u32 %v2118, 7
        %v2120 = vsub.s32 0, %v2119
        %v2121 = vrot.slane %v2117, %v2120
        %vm2122 = vcmp.eq.s32.totalorder %v2116, %v2121
        %v2123 = vsel %vm2122, 1.0, 0.0
        %v2124 = vpack.c.bf16 %v2123, %v2123
        %v2125 = vld [vmem:[#allocation2] sm:$0xff]
        %v2126 = vld [vmem:[#allocation2 + $0x8] sm:$0xff]
        %v2127 = vpack.c.bf16 %v2082, %v2080
        %v2128 = vpack.c.bf16 %v2083, %v2081
        %v2129 = vpack.c.bf16 %v2086, %v2084
        %v2130 = vpack.c.bf16 %v2087, %v2085
        %v2131 = vpack.c.bf16 %v2090, %v2088
        %v2132 = vpack.c.bf16 %v2091, %v2089
        %v2133 = vpack.c.bf16 %v2094, %v2092
        %v2134 = vpack.c.bf16 %v2095, %v2093
        %v2135 = vpack.c.bf16 %v2098, %v2096
        %v2136 = vpack.c.bf16 %v2099, %v2097
        %v2137 = vpack.c.bf16 %v2102, %v2100
        %v2138 = vpack.c.bf16 %v2103, %v2101
        %v2139 = vpack.c.bf16 %v2106, %v2104
        %v2140 = vpack.c.bf16 %v2107, %v2105
        %v2141 = vpack.c.bf16 %v2110, %v2108
        %v2142 = vpack.c.bf16 %v2111, %v2109
        %2143 = vmatprep.subr.bf16.mxu0 %v2142
        %2144 = vmatpush1.bf16.msra.mxu0 %v2141
        %2145 = vmatprep.subr.bf16.mxu0 %v2140
        %2146 = vmatpush1.bf16.msra.mxu0 %v2139
        %2147 = vmatprep.subr.bf16.mxu0 %v2138
        %2148 = vmatpush1.bf16.msra.mxu0 %v2137
        %2149 = vmatprep.subr.bf16.mxu0 %v2136
        %2150 = vmatpush1.bf16.msra.mxu0 %v2135
        %2151 = vmatprep.subr.bf16.mxu0 %v2134
        %2152 = vmatpush1.bf16.msra.mxu0 %v2133
        %2153 = vmatprep.subr.bf16.mxu0 %v2132
        %2154 = vmatpush1.bf16.msra.mxu0 %v2131
        %2155 = vmatprep.subr.bf16.mxu0 %v2130
        %2156 = vmatpush1.bf16.msra.mxu0 %v2129
        %2157 = vmatprep.subr.bf16.mxu0 %v2128
        %2158 = vmatpush1.bf16.msra.mxu0 %v2127
        %2159 = vmatprep.subr.bf16.mxu0 0
        %2160 = vmatpush2.bf16.msra.mxu0 0
        %2161 = vmatprep.subr.bf16.mxu0 0
        %2162 = vmatpush2.bf16.msra.mxu0 0
        %2163 = vmatprep.subr.bf16.mxu0 0
        %2164 = vmatpush2.bf16.msra.mxu0 0
        %2165 = vmatprep.subr.bf16.mxu0 0
        %2166 = vmatpush2.bf16.msra.mxu0 0
        %2167 = vmatprep.subr.bf16.mxu0 0
        %2168 = vmatpush2.bf16.msra.mxu0 0
        %2169 = vmatprep.subr.bf16.mxu0 0
        %2170 = vmatpush2.bf16.msra.mxu0 0
        %2171 = vmatprep.subr.bf16.mxu0 0
        %2172 = vmatpush2.bf16.msra.mxu0 0
        %2173 = vmatprep.subr.bf16.mxu0 0
        %2174 = vmatpush2.bf16.msra.mxu0 0
        %2175 = vmatprep.mubr.bf16.mxu0 0
        %2176 = vmatmul.mubr.bf16.gmra.mxu0 %v2124
        %v2177 = vpop.f32.mrf.mxu0
        %v2178 = vadd.f32 0.0, %v2177
        %v2179 = vpop.f32.mrf.mxu0
        %v2180 = vadd.f32 0.0, %v2179
        %v2181 = vpop.f32.mrf.mxu0
        %v2182 = vpop.f32.mrf.mxu0
        %2183 = vdwg.mxu0
        %v2184 = vadd.f32 %v2125, %v2178
        %v2185 = vadd.f32 %v2126, %v2180
        %2186 = vst [vmem:[#allocation2] sm:$0xff] %v2184
        %2187 = vst.msk [vmem:[#allocation2 + $0x8] sm:$0xff] %vm1259, %v2185
      $region88: #{tpu_custom_call.1} parent=79 // pred_fallthru
        _
      %p2188 = scmp.eq.s32.totalorder %s43, 1
      // Predicated region
      $region89: #{tpu_custom_call.1} parent=79 // pred_check
        %p2189 = pneg %p2188
      $region90: #{tpu_custom_call.1} parent=79 // pred_check_branch
        %2191 = sbr.rel (%p2189) target = $region92
      $region91: #{tpu_custom_call.1} parent=79 // pred_region
        %v2192 = vld [vmem:[#allocation2] sm:$0xff]
        %v2193 = vld [vmem:[#allocation2 + $0x8] sm:$0xff]
        %v2194 = vmul.f32 %v2192, %v2192
        %2196 = vrot.lane.b32.xlu0 %v2194, 112
        %v2197 = vpop.permute.xlu0 %2196
        %v2199 = vadd.f32 %v2194, %v2197
        %2200 = vrot.lane.b32.xlu0 %v2194, 96
        %v2201 = vpop.permute.xlu0 %2200
        %v2203 = vadd.f32 %v2199, %v2201
        %v2204 = vadd.f32 %v2203, 1e-30
        %v2205 = vrsqrt.pop %v2204
        %v2206 = vmul.f32 %v2204, %v2205
        %vm2207 = vcmp.eq.f32.partialorder %v2204, inf
        %v2208 = vsel %vm2207, %v2204, %v2206
        %vm2209 = vcmp.eq.f32.partialorder %v2204, 0.0
        %v2210 = vand.u32 %v2204, 2147483648
        %v2211 = vsel %vm2209, %v2210, %v2208
        %v2212 = vld [vmem:[%s10] sm:$0x1]
        %v2214 = vlaneseq
        %v2215 = vshrl.u32 %v2214, 7
        %v2216 = vsub.s32 0, %v2215
        %v2217 = vrot.slane %v2212, %v2216
        %2218 = vrot.lane.b32.xlu0 %v2217, 16
        %v2219 = vpop.permute.xlu0 %2218
        %v2221 = vmul.f32 %v2211, %v2219
        %2222 = vrot.lane.b32.xlu0 %v2194, 80
        %v2223 = vpop.permute.xlu0 %2222
        %v2225 = vadd.f32 %v2203, %v2223
        %v2226 = vmul.f32 %v2193, %v2193
        %2228 = vrot.lane.b32.xlu0 %v2226, 64
        %v2229 = vpop.permute.xlu0 %2228
        %v2231 = vadd.f32 %v2225, %v2229
        %2233 = vrot.lane.b32.xlu0 %v2192, 80
        %v2234 = vpop.permute.xlu0 %2233
        %v2236 = vmul.f32 %v2192, %v2234
        %v2237 = vadd.f32 %v2231, %v2236
        %v2238 = vmul.f32 %v2237, 2.0
        %v2239 = vadd.f32 %v2238, 1e-30
        %v2240 = vrsqrt.pop %v2239
        %v2241 = vmul.f32 %v2239, %v2240
        %vm2242 = vcmp.eq.f32.partialorder %v2239, inf
        %v2243 = vsel %vm2242, %v2239, %v2241
        %vm2244 = vcmp.eq.f32.partialorder %v2239, 0.0
        %v2245 = vand.u32 %v2239, 2147483648
        %v2246 = vsel %vm2244, %v2245, %v2243
        %v2247 = vld [vmem:[%s11] sm:$0x1]
        %v2249 = vlaneseq
        %v2250 = vshrl.u32 %v2249, 7
        %v2251 = vsub.s32 0, %v2250
        %v2252 = vrot.slane %v2247, %v2251
        %2253 = vrot.lane.b32.xlu0 %v2252, 64
        %v2254 = vpop.permute.xlu0 %2253
        %v2256 = vmul.f32 %v2246, %v2254
        %v2257 = vld [vmem:[%s813] sm:$0xff]
        %v2258 = vld [vmem:[%s8] sm:$0xff]
        %v2259 = vld [vmem:[%s8 + $0x8] sm:$0xff]
        %v2260 = vld [vmem:[%s9] sm:$0x1]
        %v2262 = vlaneseq
        %v2263 = vshrl.u32 %v2262, 7
        %v2264 = vsub.s32 0, %v2263
        %v2265 = vrot.slane %v2260, %v2264
        %vm2267 = vcmask 130048
        %v2269 = vsel %vm2267, %v2257, 0
        %2271 = vmatprep.subr.mxu0 0.0
        %2272 = vmatpush1.msra.mxu0 0.0
        %2273 = vmatprep.subr.mxu0 0.0
        %2274 = vmatpush1.msra.mxu0 0.0
        %2275 = vmatprep.subr.mxu0 0.0
        %2276 = vmatpush1.msra.mxu0 0.0
        %2277 = vmatprep.subr.mxu0 0.0
        %2278 = vmatpush1.msra.mxu0 0.0
        %2279 = vmatprep.subr.mxu0 0.0
        %2280 = vmatpush1.msra.mxu0 0.0
        %2281 = vmatprep.subr.mxu0 0.0
        %2282 = vmatpush1.msra.mxu0 0.0
        %2283 = vmatprep.subr.mxu0 0.0
        %2284 = vmatpush1.msra.mxu0 0.0
        %2285 = vmatprep.subr.mxu0 0.0
        %2286 = vmatpush1.msra.mxu0 0.0
        %2287 = vmatprep.subr.mxu0 0.0
        %2288 = vmatpush1.msra.mxu0 0.0
        %2289 = vmatprep.subr.mxu0 0.0
        %2290 = vmatpush1.msra.mxu0 0.0
        %2291 = vmatprep.subr.mxu0 0.0
        %2292 = vmatpush1.msra.mxu0 0.0
        %2293 = vmatprep.subr.mxu0 0.0
        %2294 = vmatpush1.msra.mxu0 0.0
        %2295 = vmatprep.subr.mxu0 0.0
        %2296 = vmatpush1.msra.mxu0 0.0
        %2297 = vmatprep.subr.mxu0 0.0
        %2298 = vmatpush1.msra.mxu0 0.0
        %2299 = vmatprep.subr.mxu0 0.0
        %2300 = vmatpush1.msra.mxu0 %v2259
        %2301 = vmatprep.subr.mxu0 0.0
        %2302 = vmatpush1.msra.mxu0 %v2258
        %2303 = vmatprep.subr.mxu0 0.0
        %2304 = vmatpush2.msra.mxu0 0.0
        %2305 = vmatprep.subr.mxu0 0.0
        %2306 = vmatpush2.msra.mxu0 0.0
        %2307 = vmatprep.subr.mxu0 0.0
        %2308 = vmatpush2.msra.mxu0 0.0
        %2309 = vmatprep.subr.mxu0 0.0
        %2310 = vmatpush2.msra.mxu0 0.0
        %2311 = vmatprep.subr.mxu0 0.0
        %2312 = vmatpush2.msra.mxu0 0.0
        %2313 = vmatprep.subr.mxu0 0.0
        %2314 = vmatpush2.msra.mxu0 0.0
        %2315 = vmatprep.subr.mxu0 0.0
        %2316 = vmatpush2.msra.mxu0 0.0
        %2317 = vmatprep.subr.mxu0 0.0
        %2318 = vmatpush2.msra.mxu0 0.0
        %2319 = vmatprep.subr.mxu0 0.0
        %2320 = vmatpush2.msra.mxu0 0.0
        %2321 = vmatprep.subr.mxu0 0.0
        %2322 = vmatpush2.msra.mxu0 0.0
        %2323 = vmatprep.subr.mxu0 0.0
        %2324 = vmatpush2.msra.mxu0 0.0
        %2325 = vmatprep.subr.mxu0 0.0
        %2326 = vmatpush2.msra.mxu0 0.0
        %2327 = vmatprep.subr.mxu0 0.0
        %2328 = vmatpush2.msra.mxu0 0.0
        %2329 = vmatprep.subr.mxu0 0.0
        %2330 = vmatpush2.msra.mxu0 0.0
        %2331 = vmatprep.subr.mxu0 0.0
        %2332 = vmatpush2.msra.mxu0 0.0
        %2333 = vmatprep.subr.mxu0 0.0
        %2334 = vmatpush2.msra.mxu0 0.0
        %2335 = vmatprep.mubr.f32.mxu0 0.0
        %2336 = vmatmul.mubr.f32.gmra.mxu0 %v2269
        %v2337 = vpop.f32.mrf.mxu0
        %v2338 = vadd.f32 %v2265, %v2337
        %v2339 = vpop.f32.mrf.mxu0
        %2340 = vdwg.mxu0
        %2342 = vrot.lane.b32.xlu0 %v2221, 112
        %v2343 = vpop.permute.xlu0 %2342
        %v2345 = vadd.f32 %v2192, %v2343
        %2347 = vrot.lane.b32.xlu0 %v2256, 64
        %v2348 = vpop.permute.xlu0 %2347
        %v2350 = vadd.f32 %v2345, %v2348
        %v2351 = vadd.f32 %v2350, %v2338
        %2352 = vst.msk [vmem:[%s817] sm:$0xff] %vm2267, %v2351
      $region92: #{tpu_custom_call.1} parent=79 // pred_fallthru
        _
      %p2353 = scmp.lt.s32.totalorder %s42, 3
      %s2354 = scalar_select %p2353, %s42, 3
      %s2355 = smul.addr %s2354, 8
      %s2356 = scalar_lea.vmem %s17, %s2355
      // Predicated region
      $region93: #{tpu_custom_call.1} parent=79 // pred_check
        %p2357 = pneg %p472
      $region94: #{tpu_custom_call.1} parent=79 // pred_check_branch
        %2359 = sbr.rel (%p2357) target = $region96
      $region95: #{tpu_custom_call.1} parent=79 // pred_region
        _
      $region96: #{tpu_custom_call.1} parent=79 // pred_fallthru
        _
    $region80: #{tpu_custom_call.1} parent=5 // pred_fallthru
      _
    %p2360 = scmp.le.s32.totalorder 2, %s33
    // Predicated region
    $region97: #{tpu_custom_call.1} parent=5 // pred_check
      %p2361 = pneg %p2360
    $region98: #{tpu_custom_call.1} parent=5 // pred_check_branch
      %2363 = sbr.rel (%p2361) target = $region100
    $region99: #{tpu_custom_call.1} parent=5 // pred_region
      %s2364 = ssub.s32 %s33, 2
      // Predicated region
      $region101: #{tpu_custom_call.1} parent=99 // pred_check
        %p2365 = pneg %p478
      $region102: #{tpu_custom_call.1} parent=99 // pred_check_branch
        %2367 = sbr.rel (%p2365) target = $region104
      $region103: #{tpu_custom_call.1} parent=99 // pred_region
        %p2368 = scmp.lt.s32.totalorder %s44, 3
        %s2369 = scalar_select %p2368, %s44, 3
        %s2370 = smul.addr %s2369, 8
        %s2371 = scalar_lea.vmem %s17, %s2370
      $region104: #{tpu_custom_call.1} parent=99 // pred_fallthru
        _
    $region100: #{tpu_custom_call.1} parent=5 // pred_fallthru
      _
  $region6: #{tpu_custom_call.1} parent=0 // loop_footer
    %s37 = sadd.s32 1, %s33
  $region7: #{tpu_custom_call.1} parent=0 // loop_footer_branch
    %32 = sbr.rel target = $region3
  $region8: #{tpu_custom_call.1} parent=0 // loop_exit
    _

</llo_original>
